<compile_context>
chip_gen: v6e
topology: v6e:2x2x1
jax: 0.10.0
libtpu: 0.0.40
codegen_flags: <defaults>
</compile_context>

<pallas_src>
import numpy as np

import jax
import jax.numpy as jnp
from jax.experimental import pallas as pl
from jax.experimental.pallas import tpu as pltpu


# ----------------------------------------------------------------------------
# Fused kernel factory: conv0 -> pool -> conv1 -> pool -> fc -> out -> softmax
# ----------------------------------------------------------------------------
def _make_net_kernel(conv_meta, n_fc):
    n_conv = len(conv_meta)

    def kernel(*args):
        x_ref = args[0]
        pos = 1
        conv_refs = []
        for _ in range(n_conv):
            conv_refs.append(args[pos:pos + 3]); pos += 3          # wb, b, s
        fc_refs = []
        for _ in range(n_fc):
            fc_refs.append(args[pos:pos + 2]); pos += 2            # wfc, bfc
        wout_ref, bout_ref = args[pos], args[pos + 1]; pos += 2
        out_ref = args[pos]; pos += 1
        scratch, fcbuf = args[pos], args[pos + 1]

        n_batch = x_ref.shape[0]

        # Zero the staging scratch once: its dead lane blocks are read by the
        # conv dots (they hit zero weight rows) and must never contain NaNs.
        scratch[...] = jnp.zeros_like(scratch)

        # ------------- per-sample conv stages (everything stays in VMEM) -----
        for n in range(n_batch):                        # static unroll (N<=2)
            act = x_ref[n]                              # (H_in, W_in*C_in) f32
            for (wb_ref, b_ref, s_ref), md in zip(conv_refs, conv_meta):
                k, win, stride = md["k"], md["win"], md["stride"]
                ho, cout = md["ho"], md["cout"]
                # Stage k row-shifted copies side by side (128-aligned lane
                # blocks) -> a single MXU push per conv layer.
                for kh in range(k):
                    scratch[0:ho, kh * stride:kh * stride + win] = (
                        act[kh:kh + ho, :].astype(jnp.bfloat16))
                y = jnp.dot(scratch[0:ho, 0:k * stride], wb_ref[...],
                            preferred_element_type=jnp.float32)
                y = jnp.maximum(y + b_ref[...], 0.0)               # bias + ReLU
                yb = y.astype(jnp.bfloat16)
                # 2x2 max-pool: H via 0/1 selector dots (compacts rows), W via a
                # lane-offset slice max on the VPU (result stays strided; the
                # dead lanes hit zero rows folded into the next offline weight).
                mh = jnp.maximum(
                    jnp.dot(s_ref[0], yb, preferred_element_type=jnp.float32),
                    jnp.dot(s_ref[1], yb, preferred_element_type=jnp.float32))
                cw = mh.shape[1]
                act = jnp.maximum(mh[:, 0:cw - cout], mh[:, cout:cw])
            # Pack this sample's pooled activation as one contiguous fc row.
            act_w = act.shape[1]
            for r in range(act.shape[0]):
                fcbuf[n:n + 1, r * act_w:(r + 1) * act_w] = (
                    act[r:r + 1, :].astype(jnp.bfloat16))

        # ------------- batched tail: fc(+ReLU) -> out -> softmax -------------
        h = fcbuf[...]                                             # (N, fc_in) bf16
        for wfc_ref, bfc_ref in fc_refs:
            h = jnp.dot(h, wfc_ref[...],
                        preferred_element_type=jnp.float32) + bfc_ref[...]
            h = jnp.maximum(h, 0.0).astype(jnp.bfloat16)
        logits = jnp.dot(h, wout_ref[...],
                         preferred_element_type=jnp.float32) + bout_ref[...]
        m = jnp.max(logits, axis=-1, keepdims=True)
        e = jnp.exp(logits - m)
        den = jnp.sum(e, axis=-1, keepdims=True)
        inv = pl.reciprocal(den, approx=True)                      # EUP
        inv = inv * (2.0 - den * inv)                              # Newton -> ~f32 exact
        probs = (e * inv).astype(out_ref.dtype)
        if out_ref.ndim == 3:            # batch-grid path: block (1, 1, out_dim)
            out_ref[0] = probs
        else:                            # grid-less: single lane-dense (N, out) store
            out_ref[...] = probs

    return kernel


def net_forward(x_nchw, ops, meta, *, batch_grid=False):
    """x_nchw: (N, C, H, W) f32.  ops/meta from build_kernel_operands."""
    n, c, h0, w0 = x_nchw.shape
    # One-time input layout change: NCHW -> (N, H, W*C) with lanes = (w, c).
    x = jnp.transpose(x_nchw, (0, 2, 3, 1)).reshape(n, h0, w0 * c).astype(jnp.float32)
    kernel = _make_net_kernel(meta["conv"], meta["n_fc"])
    out_dim = meta["out_dim"]
    cost = pl.CostEstimate(
        flops=int(n * meta["flops_per_sample"]),
        transcendentals=int(n * (out_dim + 1)),
        bytes_accessed=int(sum(int(o.size) * o.dtype.itemsize for o in ops)
                           + x.size * 4 + n * out_dim * 4),
    )
    scratch_act = pltpu.VMEM((meta["scratch_rows"], meta["scratch_cols"]),
                             jnp.bfloat16)

    if not batch_grid:
        # Single invocation, batch unrolled in-kernel.  VMEM footprint is
        # ~0.2 MiB (weights + scratch), far under v5e/v6e/v7x limits, so no
        # tiling/grid is needed for memory reasons.
        return pl.pallas_call(
            kernel,
            out_shape=jax.ShapeDtypeStruct((n, out_dim), jnp.float32),
            in_specs=[pl.BlockSpec(memory_space=pltpu.MemorySpace.VMEM)
                      for _ in range(1 + len(ops))],
            out_specs=pl.BlockSpec(memory_space=pltpu.MemorySpace.VMEM),
            scratch_shapes=[scratch_act,
                            pltpu.VMEM((n, meta["fc_in"]), jnp.bfloat16)],
            cost_estimate=cost,
        )(x, *ops)

    # Batch-parallel variant: one sample per grid step, sharded across
    # TensorCores (pays off on v7x's 2 TCs; on 1-TC chips it is just a loop).
    def _const_spec(arr):
        zeros = (0,) * arr.ndim
        return pl.BlockSpec(arr.shape, lambda i, _z=zeros: _z)

    out3 = pl.pallas_call(
        kernel,
        out_shape=jax.ShapeDtypeStruct((n, 1, out_dim), jnp.float32),
        grid=(n,),
        in_specs=[pl.BlockSpec((1, h0, w0 * c), lambda i: (i, 0, 0))]
                 + [_const_spec(o) for o in ops],
        out_specs=pl.BlockSpec((1, 1, out_dim), lambda i: (i, 0, 0)),
        scratch_shapes=[scratch_act,
                        pltpu.VMEM((1, meta["fc_in"]), jnp.bfloat16)],
        compiler_params=pltpu.CompilerParams(dimension_semantics=("parallel",)),
        cost_estimate=cost,
    )(x, *ops)
    return out3.reshape(n, out_dim)


# ----------------------------------------------------------------------------
# Parameter folding (runs once, outside the kernel): kh-stacked Toeplitz conv
# slabs, row-pool selectors, pool-stride + NCHW-flatten folded into fc weight.
# ----------------------------------------------------------------------------
def init_torch_style_params(key, in_channels, spatial, conv_layers,
                            linear_layers, output_size):
    """Random params in PyTorch-native layouts: Conv2d (Cout,Cin,kh,kw), Linear (out,in)."""
    params = {"conv": [], "fc": []}
    c, h, w = in_channels, spatial, spatial
    for (out_c, k) in conv_layers:
        key, kw_, kb_ = jax.random.split(key, 3)
        params["conv"].append((0.1 * jax.random.normal(kw_, (out_c, c, k, k), jnp.float32),
                               0.1 * jax.random.normal(kb_, (out_c,), jnp.float32)))
        c, h, w = out_c, (h - k + 1) // 2, (w - k + 1) // 2
    feat = c * h * w
    for size in linear_layers:
        key, kw_, kb_ = jax.random.split(key, 3)
        params["fc"].append((0.1 * jax.random.normal(kw_, (size, feat), jnp.float32),
                             0.1 * jax.random.normal(kb_, (size,), jnp.float32)))
        feat = size
    key, kw_, kb_ = jax.random.split(key, 3)
    params["out"] = (0.1 * jax.random.normal(kw_, (output_size, feat), jnp.float32),
                     0.1 * jax.random.normal(kb_, (output_size,), jnp.float32))
    return params


def build_kernel_operands(params, in_channels, spatial):
    ops, conv_meta = [], []
    flops = 0
    c, h, w = in_channels, spatial, spatial
    in_width = w * c            # lane width of the (possibly strided) input row
    step = c                    # lane offset between consecutive valid spatial cols
    for (wgt, bias) in params["conv"]:
        wgt = np.asarray(wgt, np.float32)
        bias = np.asarray(bias, np.float32)
        cout, cin, k, _ = wgt.shape
        ho, wo = h - k + 1, w - k + 1
        hp, wp = ho // 2, wo // 2
        stride = ((in_width + 127) // 128) * 128       # 128-aligned staging blocks
        # kh-stacked banded (Toeplitz-along-W) weight: rows index the staged
        # (kh, w_in, cin) lanes, cols index (w_out, cout) lanes; rows that fall
        # on pool-stride / padding dead lanes stay zero.
        wb = np.zeros((k, stride, wo * cout), np.float32)
        for kh in range(k):
            for kw_ in range(k):
                blk = wgt[:, :, kh, kw_].T                         # (cin, cout)
                for wo_i in range(wo):
                    r0 = (wo_i + kw_) * step
                    wb[kh, r0:r0 + cin, wo_i * cout:(wo_i + 1) * cout] = blk
        wb = wb.reshape(k * stride, wo * cout)
        b_row = np.tile(bias, wo)[None, :]                          # (1, wo*cout)
        # Row-pool selectors: even / odd conv-output rows.
        s = np.zeros((2, hp, ho), np.float32)
        s[0, np.arange(hp), 2 * np.arange(hp)] = 1.0
        s[1, np.arange(hp), 2 * np.arange(hp) + 1] = 1.0
        ops += [jnp.asarray(wb, jnp.bfloat16),
                jnp.asarray(b_row, jnp.float32),
                jnp.asarray(s, jnp.bfloat16)]
        conv_meta.append(dict(k=k, win=in_width, stride=stride, ho=ho, cout=cout))
        flops += 2 * ho * (k * stride) * (wo * cout) + 2 * (2 * hp * ho * (wo * cout))
        # Next layer's input: row-pooled + lane-pair-maxed (uncompacted) rows.
        c, h, w = cout, hp, wp
        in_width = (wo - 1) * cout
        step = 2 * cout
    scratch_rows = max(md["ho"] for md in conv_meta)
    scratch_cols = max(md["k"] * md["stride"] for md in conv_meta)
    fc_in = h * in_width
    # fc0: fold torch.flatten's NCHW ordering AND the pool-stride compaction
    # into the weight rows (dead lanes -> zero rows).
    fc_params = params["fc"]
    w_fc0, b_fc0 = fc_params[0]
    wt = np.asarray(w_fc0, np.float32).T                # (c*h*w torch order, fc_dim)
    fc_dim = wt.shape[1]
    wfc = np.zeros((fc_in, fc_dim), np.float32)
    for r in range(h):
        for j in range(w):
            for ci in range(c):
                ours = r * in_width + j * step + ci     # packed kernel-layout index
                theirs = ci * (h * w) + r * w + j       # torch flatten index
                wfc[ours, :] = wt[theirs, :]
    ops += [jnp.asarray(wfc, jnp.bfloat16),
            jnp.asarray(np.asarray(b_fc0, np.float32)[None, :], jnp.float32)]
    flops += 2 * fc_in * fc_dim
    feat = fc_dim
    for (w_l, b_l) in fc_params[1:]:
        w_l = np.asarray(w_l, np.float32)
        ops += [jnp.asarray(w_l.T, jnp.bfloat16),
                jnp.asarray(np.asarray(b_l, np.float32)[None, :], jnp.float32)]
        flops += 2 * feat * w_l.shape[0]
        feat = w_l.shape[0]
    w_out, b_out = params["out"]
    w_out = np.asarray(w_out, np.float32)
    ops += [jnp.asarray(w_out.T, jnp.bfloat16),
            jnp.asarray(np.asarray(b_out, np.float32)[None, :], jnp.float32)]
    out_dim = w_out.shape[0]
    flops += 2 * feat * out_dim
    meta = dict(conv=conv_meta, n_fc=len(fc_params), fc_in=fc_in, out_dim=out_dim,
                scratch_rows=scratch_rows, scratch_cols=scratch_cols,
                flops_per_sample=flops)
    return ops, meta


# ----------------------------------------------------------------------------
# Plain NumPy reference (exact f32) for correctness checking.
# ----------------------------------------------------------------------------
def reference_forward(x_nchw, params):
    x = np.asarray(x_nchw, np.float32)
    for (wgt, bias) in params["conv"]:
        wgt = np.asarray(wgt, np.float32)
        bias = np.asarray(bias, np.float32)
        n, _, h, w = x.shape
        cout, cin, k, _ = wgt.shape
        ho, wo = h - k + 1, w - k + 1
        y = np.zeros((n, cout, ho, wo), np.float32)
        for kh in range(k):
            for kw_ in range(k):
                patch = x[:, :, kh:kh + ho, kw_:kw_ + wo]
                y += np.einsum('nchw,oc->nohw', patch, wgt[:, :, kh, kw_])
        y = np.maximum(y + bias[None, :, None, None], 0.0)
        hp, wp = ho // 2, wo // 2
        x = y[:, :, :2 * hp, :2 * wp].reshape(n, cout, hp, 2, wp, 2).max(axis=(3, 5))
    x = x.reshape(x.shape[0], -1)
    for (w_fc, b_fc) in params["fc"]:
        x = np.maximum(x @ np.asarray(w_fc, np.float32).T + np.asarray(b_fc, np.float32), 0.0)
    w_out, b_out = params["out"]
    x = x @ np.asarray(w_out, np.float32).T + np.asarray(b_out, np.float32)
    e = np.exp(x - x.max(axis=1, keepdims=True))
    return e / e.sum(axis=1, keepdims=True)


if __name__ == "__main__":
    key = jax.random.PRNGKey(0)
    key, kx = jax.random.split(key)

    batch, in_c, spatial = 2, 4, 16
    conv_layers = [(8, 3), (16, 3)]
    linear_layers = [32]
    output_size = 10

    x = jax.random.normal(kx, (batch, in_c, spatial, spatial), jnp.float32)
    params = init_torch_style_params(key, in_c, spatial, conv_layers,
                                     linear_layers, output_size)
    ops, meta = build_kernel_operands(params, in_c, spatial)

    fwd = jax.jit(lambda xx, oo: net_forward(xx, oo, meta))
    out = jax.block_until_ready(fwd(x, ops))

    assert out.shape == (batch, output_size), out.shape
    assert jnp.allclose(jnp.sum(out, axis=-1), 1.0, atol=1e-4)

    ref = reference_forward(np.asarray(x), params)
    # bf16 MXU operands with f32 accumulation -> slightly loosened vs pure f32.
    np.testing.assert_allclose(np.asarray(out), ref, rtol=5e-2, atol=5e-3)

    # Batch-parallel grid variant (one sample per TensorCore on v7x).
    fwd_grid = jax.jit(lambda xx, oo: net_forward(xx, oo, meta, batch_grid=True))
    out_grid = jax.block_until_ready(fwd_grid(x, ops))
    assert out_grid.shape == (batch, output_size), out_grid.shape
    np.testing.assert_allclose(np.asarray(out_grid), ref, rtol=5e-2, atol=5e-3)
    np.testing.assert_allclose(np.asarray(out_grid), np.asarray(out),
                               rtol=1e-5, atol=1e-5)

    print("KERNEL_OK")
</pallas_src>

<mosaic_0001>
module attributes {stable_mosaic.version = 11 : i64} {
  func.func @kernel(%arg0: memref<2x16x64xf32, #tpu.memory_space<vmem>>, %arg1: memref<384x112xbf16, #tpu.memory_space<vmem>>, %arg2: memref<1x112xf32, #tpu.memory_space<vmem>>, %arg3: memref<2x7x14xbf16, #tpu.memory_space<vmem>>, %arg4: memref<384x80xbf16, #tpu.memory_space<vmem>>, %arg5: memref<1x80xf32, #tpu.memory_space<vmem>>, %arg6: memref<2x2x5xbf16, #tpu.memory_space<vmem>>, %arg7: memref<128x32xbf16, #tpu.memory_space<vmem>>, %arg8: memref<1x32xf32, #tpu.memory_space<vmem>>, %arg9: memref<32x10xbf16, #tpu.memory_space<vmem>>, %arg10: memref<1x10xf32, #tpu.memory_space<vmem>>, %arg11: memref<2x10xf32, #tpu.memory_space<vmem>>, %arg12: memref<14x384xbf16, #tpu.memory_space<vmem>>, %arg13: memref<2x128xbf16, #tpu.memory_space<vmem>>) attributes {dimension_semantics = [], scalar_prefetch = 0 : i64, scratch_operands = 2 : i64, tpu.core_type = #tpu.core_type<tc>} {
    %cst = arith.constant 0.000000e+00 : bf16
    %0 = vector.broadcast %cst : bf16 to vector<14x384xbf16>
    %c0 = arith.constant 0 : index
    %c0_0 = arith.constant 0 : index
    %1 = vector.load %arg12[%c0, %c0_0] : memref<14x384xbf16, #tpu.memory_space<vmem>>, vector<14x384xbf16>
    tpu.vector_store %arg12[%c0, %c0_0], %0 {strides = array<i32>} : memref<14x384xbf16, #tpu.memory_space<vmem>>, vector<14x384xbf16>,
    %c0_1 = arith.constant 0 : index
    %c0_2 = arith.constant 0 : index
    %c0_3 = arith.constant 0 : index
    %2 = vector.load %arg0[%c0_1, %c0_2, %c0_3] : memref<2x16x64xf32, #tpu.memory_space<vmem>>, vector<1x16x64xf32>
    %3 = vector.shape_cast %2 : vector<1x16x64xf32> to vector<16x64xf32>
    %4 = vector.extract_strided_slice %3 {offsets = [0, 0], sizes = [14, 64], strides = [1, 1]} : vector<16x64xf32> to vector<14x64xf32>
    %5 = arith.truncf %4 : vector<14x64xf32> to vector<14x64xbf16>
    %c0_4 = arith.constant 0 : index
    %c0_5 = arith.constant 0 : index
    %6 = vector.load %arg12[%c0_4, %c0_5] : memref<14x384xbf16, #tpu.memory_space<vmem>>, vector<14x64xbf16>
    tpu.vector_store %arg12[%c0_4, %c0_5], %5 {strides = array<i32>} : memref<14x384xbf16, #tpu.memory_space<vmem>>, vector<14x64xbf16>,
    %7 = vector.extract_strided_slice %3 {offsets = [1, 0], sizes = [14, 64], strides = [1, 1]} : vector<16x64xf32> to vector<14x64xf32>
    %8 = arith.truncf %7 : vector<14x64xf32> to vector<14x64xbf16>
    %c0_6 = arith.constant 0 : index
    %c128 = arith.constant 128 : index
    %9 = vector.load %arg12[%c0_6, %c128] : memref<14x384xbf16, #tpu.memory_space<vmem>>, vector<14x64xbf16>
    tpu.vector_store %arg12[%c0_6, %c128], %8 {strides = array<i32>} : memref<14x384xbf16, #tpu.memory_space<vmem>>, vector<14x64xbf16>,
    %10 = vector.extract_strided_slice %3 {offsets = [2, 0], sizes = [14, 64], strides = [1, 1]} : vector<16x64xf32> to vector<14x64xf32>
    %11 = arith.truncf %10 : vector<14x64xf32> to vector<14x64xbf16>
    %c0_7 = arith.constant 0 : index
    %c256 = arith.constant 256 : index
    %12 = vector.load %arg12[%c0_7, %c256] : memref<14x384xbf16, #tpu.memory_space<vmem>>, vector<14x64xbf16>
    tpu.vector_store %arg12[%c0_7, %c256], %11 {strides = array<i32>} : memref<14x384xbf16, #tpu.memory_space<vmem>>, vector<14x64xbf16>,
    %c0_8 = arith.constant 0 : index
    %c0_9 = arith.constant 0 : index
    %13 = vector.load %arg12[%c0_8, %c0_9] : memref<14x384xbf16, #tpu.memory_space<vmem>>, vector<14x384xbf16>
    %c0_10 = arith.constant 0 : index
    %c0_11 = arith.constant 0 : index
    %14 = vector.load %arg1[%c0_10, %c0_11] : memref<384x112xbf16, #tpu.memory_space<vmem>>, vector<384x112xbf16>
    %cst_12 = arith.constant dense<0.000000e+00> : vector<14x112xf32>
    %15 = tpu.matmul %13, %14, %cst_12 {dimension_numbers = #tpu.dot_dimension_numbers<[1], [0], [0], [1], [0, 0, 1, 1], [], []>} : vector<14x384xbf16>, vector<384x112xbf16>, vector<14x112xf32> -> vector<14x112xf32>
    %c0_13 = arith.constant 0 : index
    %c0_14 = arith.constant 0 : index
    %16 = vector.load %arg2[%c0_13, %c0_14] : memref<1x112xf32, #tpu.memory_space<vmem>>, vector<1x112xf32>
    %17 = vector.broadcast %16 : vector<1x112xf32> to vector<14x112xf32>
    %18 = arith.addf %15, %17 : vector<14x112xf32>
    %cst_15 = arith.constant 0.000000e+00 : f32
    %19 = vector.broadcast %cst_15 : f32 to vector<14x112xf32>
    %20 = arith.maximumf %18, %19 : vector<14x112xf32>
    %21 = arith.truncf %20 : vector<14x112xf32> to vector<14x112xbf16>
    %c0_16 = arith.constant 0 : index
    %c0_17 = arith.constant 0 : index
    %c0_18 = arith.constant 0 : index
    %22 = vector.load %arg3[%c0_16, %c0_17, %c0_18] : memref<2x7x14xbf16, #tpu.memory_space<vmem>>, vector<1x7x14xbf16>
    %23 = vector.shape_cast %22 : vector<1x7x14xbf16> to vector<7x14xbf16>
    %cst_19 = arith.constant dense<0.000000e+00> : vector<7x112xf32>
    %24 = tpu.matmul %23, %21, %cst_19 {dimension_numbers = #tpu.dot_dimension_numbers<[1], [0], [0], [1], [0, 0, 1, 1], [], []>} : vector<7x14xbf16>, vector<14x112xbf16>, vector<7x112xf32> -> vector<7x112xf32>
    %c1 = arith.constant 1 : index
    %c0_20 = arith.constant 0 : index
    %c0_21 = arith.constant 0 : index
    %25 = vector.load %arg3[%c1, %c0_20, %c0_21] : memref<2x7x14xbf16, #tpu.memory_space<vmem>>, vector<1x7x14xbf16>
    %26 = vector.shape_cast %25 : vector<1x7x14xbf16> to vector<7x14xbf16>
    %cst_22 = arith.constant dense<0.000000e+00> : vector<7x112xf32>
    %27 = tpu.matmul %26, %21, %cst_22 {dimension_numbers = #tpu.dot_dimension_numbers<[1], [0], [0], [1], [0, 0, 1, 1], [], []>} : vector<7x14xbf16>, vector<14x112xbf16>, vector<7x112xf32> -> vector<7x112xf32>
    %28 = arith.maximumf %24, %27 : vector<7x112xf32>
    %29 = vector.extract_strided_slice %28 {offsets = [0, 0], sizes = [7, 104], strides = [1, 1]} : vector<7x112xf32> to vector<7x104xf32>
    %30 = vector.extract_strided_slice %28 {offsets = [0, 8], sizes = [7, 104], strides = [1, 1]} : vector<7x112xf32> to vector<7x104xf32>
    %31 = arith.maximumf %29, %30 : vector<7x104xf32>
    %32 = vector.extract_strided_slice %31 {offsets = [0, 0], sizes = [5, 104], strides = [1, 1]} : vector<7x104xf32> to vector<5x104xf32>
    %33 = arith.truncf %32 : vector<5x104xf32> to vector<5x104xbf16>
    %c0_23 = arith.constant 0 : index
    %c0_24 = arith.constant 0 : index
    %34 = vector.load %arg12[%c0_23, %c0_24] : memref<14x384xbf16, #tpu.memory_space<vmem>>, vector<5x104xbf16>
    tpu.vector_store %arg12[%c0_23, %c0_24], %33 {strides = array<i32>} : memref<14x384xbf16, #tpu.memory_space<vmem>>, vector<5x104xbf16>,
    %35 = vector.extract_strided_slice %31 {offsets = [1, 0], sizes = [5, 104], strides = [1, 1]} : vector<7x104xf32> to vector<5x104xf32>
    %36 = arith.truncf %35 : vector<5x104xf32> to vector<5x104xbf16>
    %c0_25 = arith.constant 0 : index
    %c128_26 = arith.constant 128 : index
    %37 = vector.load %arg12[%c0_25, %c128_26] : memref<14x384xbf16, #tpu.memory_space<vmem>>, vector<5x104xbf16>
    tpu.vector_store %arg12[%c0_25, %c128_26], %36 {strides = array<i32>} : memref<14x384xbf16, #tpu.memory_space<vmem>>, vector<5x104xbf16>,
    %38 = vector.extract_strided_slice %31 {offsets = [2, 0], sizes = [5, 104], strides = [1, 1]} : vector<7x104xf32> to vector<5x104xf32>
    %39 = arith.truncf %38 : vector<5x104xf32> to vector<5x104xbf16>
    %c0_27 = arith.constant 0 : index
    %c256_28 = arith.constant 256 : index
    %40 = vector.load %arg12[%c0_27, %c256_28] : memref<14x384xbf16, #tpu.memory_space<vmem>>, vector<5x104xbf16>
    tpu.vector_store %arg12[%c0_27, %c256_28], %39 {strides = array<i32>} : memref<14x384xbf16, #tpu.memory_space<vmem>>, vector<5x104xbf16>,
    %c0_29 = arith.constant 0 : index
    %c0_30 = arith.constant 0 : index
    %41 = vector.load %arg12[%c0_29, %c0_30] : memref<14x384xbf16, #tpu.memory_space<vmem>>, vector<5x384xbf16>
    %c0_31 = arith.constant 0 : index
    %c0_32 = arith.constant 0 : index
    %42 = vector.load %arg4[%c0_31, %c0_32] : memref<384x80xbf16, #tpu.memory_space<vmem>>, vector<384x80xbf16>
    %cst_33 = arith.constant dense<0.000000e+00> : vector<5x80xf32>
    %43 = tpu.matmul %41, %42, %cst_33 {dimension_numbers = #tpu.dot_dimension_numbers<[1], [0], [0], [1], [0, 0, 1, 1], [], []>} : vector<5x384xbf16>, vector<384x80xbf16>, vector<5x80xf32> -> vector<5x80xf32>
    %c0_34 = arith.constant 0 : index
    %c0_35 = arith.constant 0 : index
    %44 = vector.load %arg5[%c0_34, %c0_35] : memref<1x80xf32, #tpu.memory_space<vmem>>, vector<1x80xf32>
    %45 = vector.broadcast %44 : vector<1x80xf32> to vector<5x80xf32>
    %46 = arith.addf %43, %45 : vector<5x80xf32>
    %cst_36 = arith.constant 0.000000e+00 : f32
    %47 = vector.broadcast %cst_36 : f32 to vector<5x80xf32>
    %48 = arith.maximumf %46, %47 : vector<5x80xf32>
    %49 = arith.truncf %48 : vector<5x80xf32> to vector<5x80xbf16>
    %c0_37 = arith.constant 0 : index
    %c0_38 = arith.constant 0 : index
    %c0_39 = arith.constant 0 : index
    %50 = vector.load %arg6[%c0_37, %c0_38, %c0_39] : memref<2x2x5xbf16, #tpu.memory_space<vmem>>, vector<1x2x5xbf16>
    %51 = vector.shape_cast %50 : vector<1x2x5xbf16> to vector<2x5xbf16>
    %cst_40 = arith.constant dense<0.000000e+00> : vector<2x80xf32>
    %52 = tpu.matmul %51, %49, %cst_40 {dimension_numbers = #tpu.dot_dimension_numbers<[1], [0], [0], [1], [0, 0, 1, 1], [], []>} : vector<2x5xbf16>, vector<5x80xbf16>, vector<2x80xf32> -> vector<2x80xf32>
    %c1_41 = arith.constant 1 : index
    %c0_42 = arith.constant 0 : index
    %c0_43 = arith.constant 0 : index
    %53 = vector.load %arg6[%c1_41, %c0_42, %c0_43] : memref<2x2x5xbf16, #tpu.memory_space<vmem>>, vector<1x2x5xbf16>
    %54 = vector.shape_cast %53 : vector<1x2x5xbf16> to vector<2x5xbf16>
    %cst_44 = arith.constant dense<0.000000e+00> : vector<2x80xf32>
    %55 = tpu.matmul %54, %49, %cst_44 {dimension_numbers = #tpu.dot_dimension_numbers<[1], [0], [0], [1], [0, 0, 1, 1], [], []>} : vector<2x5xbf16>, vector<5x80xbf16>, vector<2x80xf32> -> vector<2x80xf32>
    %56 = arith.maximumf %52, %55 : vector<2x80xf32>
    %57 = vector.extract_strided_slice %56 {offsets = [0, 0], sizes = [2, 64], strides = [1, 1]} : vector<2x80xf32> to vector<2x64xf32>
    %58 = vector.extract_strided_slice %56 {offsets = [0, 16], sizes = [2, 64], strides = [1, 1]} : vector<2x80xf32> to vector<2x64xf32>
    %59 = arith.maximumf %57, %58 : vector<2x64xf32>
    %60 = vector.extract_strided_slice %59 {offsets = [0, 0], sizes = [1, 64], strides = [1, 1]} : vector<2x64xf32> to vector<1x64xf32>
    %61 = arith.truncf %60 : vector<1x64xf32> to vector<1x64xbf16>
    %c0_45 = arith.constant 0 : index
    %c0_46 = arith.constant 0 : index
    %62 = vector.load %arg13[%c0_45, %c0_46] : memref<2x128xbf16, #tpu.memory_space<vmem>>, vector<1x64xbf16>
    tpu.vector_store %arg13[%c0_45, %c0_46], %61 {strides = array<i32>} : memref<2x128xbf16, #tpu.memory_space<vmem>>, vector<1x64xbf16>,
    %63 = vector.extract_strided_slice %59 {offsets = [1, 0], sizes = [1, 64], strides = [1, 1]} : vector<2x64xf32> to vector<1x64xf32>
    %64 = arith.truncf %63 : vector<1x64xf32> to vector<1x64xbf16>
    %c0_47 = arith.constant 0 : index
    %c64 = arith.constant 64 : index
    %65 = vector.load %arg13[%c0_47, %c64] : memref<2x128xbf16, #tpu.memory_space<vmem>>, vector<1x64xbf16>
    tpu.vector_store %arg13[%c0_47, %c64], %64 {strides = array<i32>} : memref<2x128xbf16, #tpu.memory_space<vmem>>, vector<1x64xbf16>,
    %c1_48 = arith.constant 1 : index
    %c0_49 = arith.constant 0 : index
    %c0_50 = arith.constant 0 : index
    %66 = vector.load %arg0[%c1_48, %c0_49, %c0_50] : memref<2x16x64xf32, #tpu.memory_space<vmem>>, vector<1x16x64xf32>
    %67 = vector.shape_cast %66 : vector<1x16x64xf32> to vector<16x64xf32>
    %68 = vector.extract_strided_slice %67 {offsets = [0, 0], sizes = [14, 64], strides = [1, 1]} : vector<16x64xf32> to vector<14x64xf32>
    %69 = arith.truncf %68 : vector<14x64xf32> to vector<14x64xbf16>
    %c0_51 = arith.constant 0 : index
    %c0_52 = arith.constant 0 : index
    %70 = vector.load %arg12[%c0_51, %c0_52] : memref<14x384xbf16, #tpu.memory_space<vmem>>, vector<14x64xbf16>
    tpu.vector_store %arg12[%c0_51, %c0_52], %69 {strides = array<i32>} : memref<14x384xbf16, #tpu.memory_space<vmem>>, vector<14x64xbf16>,
    %71 = vector.extract_strided_slice %67 {offsets = [1, 0], sizes = [14, 64], strides = [1, 1]} : vector<16x64xf32> to vector<14x64xf32>
    %72 = arith.truncf %71 : vector<14x64xf32> to vector<14x64xbf16>
    %c0_53 = arith.constant 0 : index
    %c128_54 = arith.constant 128 : index
    %73 = vector.load %arg12[%c0_53, %c128_54] : memref<14x384xbf16, #tpu.memory_space<vmem>>, vector<14x64xbf16>
    tpu.vector_store %arg12[%c0_53, %c128_54], %72 {strides = array<i32>} : memref<14x384xbf16, #tpu.memory_space<vmem>>, vector<14x64xbf16>,
    %74 = vector.extract_strided_slice %67 {offsets = [2, 0], sizes = [14, 64], strides = [1, 1]} : vector<16x64xf32> to vector<14x64xf32>
    %75 = arith.truncf %74 : vector<14x64xf32> to vector<14x64xbf16>
    %c0_55 = arith.constant 0 : index
    %c256_56 = arith.constant 256 : index
    %76 = vector.load %arg12[%c0_55, %c256_56] : memref<14x384xbf16, #tpu.memory_space<vmem>>, vector<14x64xbf16>
    tpu.vector_store %arg12[%c0_55, %c256_56], %75 {strides = array<i32>} : memref<14x384xbf16, #tpu.memory_space<vmem>>, vector<14x64xbf16>,
    %c0_57 = arith.constant 0 : index
    %c0_58 = arith.constant 0 : index
    %77 = vector.load %arg12[%c0_57, %c0_58] : memref<14x384xbf16, #tpu.memory_space<vmem>>, vector<14x384xbf16>
    %c0_59 = arith.constant 0 : index
    %c0_60 = arith.constant 0 : index
    %78 = vector.load %arg1[%c0_59, %c0_60] : memref<384x112xbf16, #tpu.memory_space<vmem>>, vector<384x112xbf16>
    %cst_61 = arith.constant dense<0.000000e+00> : vector<14x112xf32>
    %79 = tpu.matmul %77, %78, %cst_61 {dimension_numbers = #tpu.dot_dimension_numbers<[1], [0], [0], [1], [0, 0, 1, 1], [], []>} : vector<14x384xbf16>, vector<384x112xbf16>, vector<14x112xf32> -> vector<14x112xf32>
    %c0_62 = arith.constant 0 : index
    %c0_63 = arith.constant 0 : index
    %80 = vector.load %arg2[%c0_62, %c0_63] : memref<1x112xf32, #tpu.memory_space<vmem>>, vector<1x112xf32>
    %81 = vector.broadcast %80 : vector<1x112xf32> to vector<14x112xf32>
    %82 = arith.addf %79, %81 : vector<14x112xf32>
    %cst_64 = arith.constant 0.000000e+00 : f32
    %83 = vector.broadcast %cst_64 : f32 to vector<14x112xf32>
    %84 = arith.maximumf %82, %83 : vector<14x112xf32>
    %85 = arith.truncf %84 : vector<14x112xf32> to vector<14x112xbf16>
    %c0_65 = arith.constant 0 : index
    %c0_66 = arith.constant 0 : index
    %c0_67 = arith.constant 0 : index
    %86 = vector.load %arg3[%c0_65, %c0_66, %c0_67] : memref<2x7x14xbf16, #tpu.memory_space<vmem>>, vector<1x7x14xbf16>
    %87 = vector.shape_cast %86 : vector<1x7x14xbf16> to vector<7x14xbf16>
    %cst_68 = arith.constant dense<0.000000e+00> : vector<7x112xf32>
    %88 = tpu.matmul %87, %85, %cst_68 {dimension_numbers = #tpu.dot_dimension_numbers<[1], [0], [0], [1], [0, 0, 1, 1], [], []>} : vector<7x14xbf16>, vector<14x112xbf16>, vector<7x112xf32> -> vector<7x112xf32>
    %c1_69 = arith.constant 1 : index
    %c0_70 = arith.constant 0 : index
    %c0_71 = arith.constant 0 : index
    %89 = vector.load %arg3[%c1_69, %c0_70, %c0_71] : memref<2x7x14xbf16, #tpu.memory_space<vmem>>, vector<1x7x14xbf16>
    %90 = vector.shape_cast %89 : vector<1x7x14xbf16> to vector<7x14xbf16>
    %cst_72 = arith.constant dense<0.000000e+00> : vector<7x112xf32>
    %91 = tpu.matmul %90, %85, %cst_72 {dimension_numbers = #tpu.dot_dimension_numbers<[1], [0], [0], [1], [0, 0, 1, 1], [], []>} : vector<7x14xbf16>, vector<14x112xbf16>, vector<7x112xf32> -> vector<7x112xf32>
    %92 = arith.maximumf %88, %91 : vector<7x112xf32>
    %93 = vector.extract_strided_slice %92 {offsets = [0, 0], sizes = [7, 104], strides = [1, 1]} : vector<7x112xf32> to vector<7x104xf32>
    %94 = vector.extract_strided_slice %92 {offsets = [0, 8], sizes = [7, 104], strides = [1, 1]} : vector<7x112xf32> to vector<7x104xf32>
    %95 = arith.maximumf %93, %94 : vector<7x104xf32>
    %96 = vector.extract_strided_slice %95 {offsets = [0, 0], sizes = [5, 104], strides = [1, 1]} : vector<7x104xf32> to vector<5x104xf32>
    %97 = arith.truncf %96 : vector<5x104xf32> to vector<5x104xbf16>
    %c0_73 = arith.constant 0 : index
    %c0_74 = arith.constant 0 : index
    %98 = vector.load %arg12[%c0_73, %c0_74] : memref<14x384xbf16, #tpu.memory_space<vmem>>, vector<5x104xbf16>
    tpu.vector_store %arg12[%c0_73, %c0_74], %97 {strides = array<i32>} : memref<14x384xbf16, #tpu.memory_space<vmem>>, vector<5x104xbf16>,
    %99 = vector.extract_strided_slice %95 {offsets = [1, 0], sizes = [5, 104], strides = [1, 1]} : vector<7x104xf32> to vector<5x104xf32>
    %100 = arith.truncf %99 : vector<5x104xf32> to vector<5x104xbf16>
    %c0_75 = arith.constant 0 : index
    %c128_76 = arith.constant 128 : index
    %101 = vector.load %arg12[%c0_75, %c128_76] : memref<14x384xbf16, #tpu.memory_space<vmem>>, vector<5x104xbf16>
    tpu.vector_store %arg12[%c0_75, %c128_76], %100 {strides = array<i32>} : memref<14x384xbf16, #tpu.memory_space<vmem>>, vector<5x104xbf16>,
    %102 = vector.extract_strided_slice %95 {offsets = [2, 0], sizes = [5, 104], strides = [1, 1]} : vector<7x104xf32> to vector<5x104xf32>
    %103 = arith.truncf %102 : vector<5x104xf32> to vector<5x104xbf16>
    %c0_77 = arith.constant 0 : index
    %c256_78 = arith.constant 256 : index
    %104 = vector.load %arg12[%c0_77, %c256_78] : memref<14x384xbf16, #tpu.memory_space<vmem>>, vector<5x104xbf16>
    tpu.vector_store %arg12[%c0_77, %c256_78], %103 {strides = array<i32>} : memref<14x384xbf16, #tpu.memory_space<vmem>>, vector<5x104xbf16>,
    %c0_79 = arith.constant 0 : index
    %c0_80 = arith.constant 0 : index
    %105 = vector.load %arg12[%c0_79, %c0_80] : memref<14x384xbf16, #tpu.memory_space<vmem>>, vector<5x384xbf16>
    %c0_81 = arith.constant 0 : index
    %c0_82 = arith.constant 0 : index
    %106 = vector.load %arg4[%c0_81, %c0_82] : memref<384x80xbf16, #tpu.memory_space<vmem>>, vector<384x80xbf16>
    %cst_83 = arith.constant dense<0.000000e+00> : vector<5x80xf32>
    %107 = tpu.matmul %105, %106, %cst_83 {dimension_numbers = #tpu.dot_dimension_numbers<[1], [0], [0], [1], [0, 0, 1, 1], [], []>} : vector<5x384xbf16>, vector<384x80xbf16>, vector<5x80xf32> -> vector<5x80xf32>
    %c0_84 = arith.constant 0 : index
    %c0_85 = arith.constant 0 : index
    %108 = vector.load %arg5[%c0_84, %c0_85] : memref<1x80xf32, #tpu.memory_space<vmem>>, vector<1x80xf32>
    %109 = vector.broadcast %108 : vector<1x80xf32> to vector<5x80xf32>
    %110 = arith.addf %107, %109 : vector<5x80xf32>
    %cst_86 = arith.constant 0.000000e+00 : f32
    %111 = vector.broadcast %cst_86 : f32 to vector<5x80xf32>
    %112 = arith.maximumf %110, %111 : vector<5x80xf32>
    %113 = arith.truncf %112 : vector<5x80xf32> to vector<5x80xbf16>
    %c0_87 = arith.constant 0 : index
    %c0_88 = arith.constant 0 : index
    %c0_89 = arith.constant 0 : index
    %114 = vector.load %arg6[%c0_87, %c0_88, %c0_89] : memref<2x2x5xbf16, #tpu.memory_space<vmem>>, vector<1x2x5xbf16>
    %115 = vector.shape_cast %114 : vector<1x2x5xbf16> to vector<2x5xbf16>
    %cst_90 = arith.constant dense<0.000000e+00> : vector<2x80xf32>
    %116 = tpu.matmul %115, %113, %cst_90 {dimension_numbers = #tpu.dot_dimension_numbers<[1], [0], [0], [1], [0, 0, 1, 1], [], []>} : vector<2x5xbf16>, vector<5x80xbf16>, vector<2x80xf32> -> vector<2x80xf32>
    %c1_91 = arith.constant 1 : index
    %c0_92 = arith.constant 0 : index
    %c0_93 = arith.constant 0 : index
    %117 = vector.load %arg6[%c1_91, %c0_92, %c0_93] : memref<2x2x5xbf16, #tpu.memory_space<vmem>>, vector<1x2x5xbf16>
    %118 = vector.shape_cast %117 : vector<1x2x5xbf16> to vector<2x5xbf16>
    %cst_94 = arith.constant dense<0.000000e+00> : vector<2x80xf32>
    %119 = tpu.matmul %118, %113, %cst_94 {dimension_numbers = #tpu.dot_dimension_numbers<[1], [0], [0], [1], [0, 0, 1, 1], [], []>} : vector<2x5xbf16>, vector<5x80xbf16>, vector<2x80xf32> -> vector<2x80xf32>
    %120 = arith.maximumf %116, %119 : vector<2x80xf32>
    %121 = vector.extract_strided_slice %120 {offsets = [0, 0], sizes = [2, 64], strides = [1, 1]} : vector<2x80xf32> to vector<2x64xf32>
    %122 = vector.extract_strided_slice %120 {offsets = [0, 16], sizes = [2, 64], strides = [1, 1]} : vector<2x80xf32> to vector<2x64xf32>
    %123 = arith.maximumf %121, %122 : vector<2x64xf32>
    %124 = vector.extract_strided_slice %123 {offsets = [0, 0], sizes = [1, 64], strides = [1, 1]} : vector<2x64xf32> to vector<1x64xf32>
    %125 = arith.truncf %124 : vector<1x64xf32> to vector<1x64xbf16>
    %c1_95 = arith.constant 1 : index
    %c0_96 = arith.constant 0 : index
    %126 = vector.load %arg13[%c1_95, %c0_96] : memref<2x128xbf16, #tpu.memory_space<vmem>>, vector<1x64xbf16>
    tpu.vector_store %arg13[%c1_95, %c0_96], %125 {strides = array<i32>} : memref<2x128xbf16, #tpu.memory_space<vmem>>, vector<1x64xbf16>,
    %127 = vector.extract_strided_slice %123 {offsets = [1, 0], sizes = [1, 64], strides = [1, 1]} : vector<2x64xf32> to vector<1x64xf32>
    %128 = arith.truncf %127 : vector<1x64xf32> to vector<1x64xbf16>
    %c1_97 = arith.constant 1 : index
    %c64_98 = arith.constant 64 : index
    %129 = vector.load %arg13[%c1_97, %c64_98] : memref<2x128xbf16, #tpu.memory_space<vmem>>, vector<1x64xbf16>
    tpu.vector_store %arg13[%c1_97, %c64_98], %128 {strides = array<i32>} : memref<2x128xbf16, #tpu.memory_space<vmem>>, vector<1x64xbf16>,
    %c0_99 = arith.constant 0 : index
    %c0_100 = arith.constant 0 : index
    %130 = vector.load %arg13[%c0_99, %c0_100] : memref<2x128xbf16, #tpu.memory_space<vmem>>, vector<2x128xbf16>
    %c0_101 = arith.constant 0 : index
    %c0_102 = arith.constant 0 : index
    %131 = vector.load %arg7[%c0_101, %c0_102] : memref<128x32xbf16, #tpu.memory_space<vmem>>, vector<128x32xbf16>
    %cst_103 = arith.constant dense<0.000000e+00> : vector<2x32xf32>
    %132 = tpu.matmul %130, %131, %cst_103 {dimension_numbers = #tpu.dot_dimension_numbers<[1], [0], [0], [1], [0, 0, 1, 1], [], []>} : vector<2x128xbf16>, vector<128x32xbf16>, vector<2x32xf32> -> vector<2x32xf32>
    %c0_104 = arith.constant 0 : index
    %c0_105 = arith.constant 0 : index
    %133 = vector.load %arg8[%c0_104, %c0_105] : memref<1x32xf32, #tpu.memory_space<vmem>>, vector<1x32xf32>
    %134 = vector.broadcast %133 : vector<1x32xf32> to vector<2x32xf32>
    %135 = arith.addf %132, %134 : vector<2x32xf32>
    %cst_106 = arith.constant 0.000000e+00 : f32
    %136 = vector.broadcast %cst_106 : f32 to vector<2x32xf32>
    %137 = arith.maximumf %135, %136 : vector<2x32xf32>
    %138 = arith.truncf %137 : vector<2x32xf32> to vector<2x32xbf16>
    %c0_107 = arith.constant 0 : index
    %c0_108 = arith.constant 0 : index
    %139 = vector.load %arg9[%c0_107, %c0_108] : memref<32x10xbf16, #tpu.memory_space<vmem>>, vector<32x10xbf16>
    %cst_109 = arith.constant dense<0.000000e+00> : vector<2x10xf32>
    %140 = tpu.matmul %138, %139, %cst_109 {dimension_numbers = #tpu.dot_dimension_numbers<[1], [0], [0], [1], [0, 0, 1, 1], [], []>} : vector<2x32xbf16>, vector<32x10xbf16>, vector<2x10xf32> -> vector<2x10xf32>
    %c0_110 = arith.constant 0 : index
    %c0_111 = arith.constant 0 : index
    %141 = vector.load %arg10[%c0_110, %c0_111] : memref<1x10xf32, #tpu.memory_space<vmem>>, vector<1x10xf32>
    %142 = vector.broadcast %141 : vector<1x10xf32> to vector<2x10xf32>
    %143 = arith.addf %140, %142 : vector<2x10xf32>
    %cst_112 = arith.constant dense<0xFF800000> : vector<2xf32>
    %144 = vector.multi_reduction <maximumf>, %143, %cst_112 [1] : vector<2x10xf32> to vector<2xf32>
    %145 = vector.shape_cast %144 : vector<2xf32> to vector<2x1xf32>
    %146 = vector.broadcast %145 : vector<2x1xf32> to vector<2x10xf32>
    %147 = arith.subf %143, %146 : vector<2x10xf32>
    %148 = math.exp %147 : vector<2x10xf32>
    %cst_113 = arith.constant dense<0.000000e+00> : vector<2xf32>
    %149 = vector.multi_reduction <add>, %148, %cst_113 [1] : vector<2x10xf32> to vector<2xf32>
    %150 = vector.shape_cast %149 : vector<2xf32> to vector<2x1xf32>
    %151 = tpu.reciprocal %150 {approx = true} : vector<2x1xf32> -> vector<2x1xf32>
    %152 = arith.mulf %150, %151 : vector<2x1xf32>
    %cst_114 = arith.constant 2.000000e+00 : f32
    %153 = vector.broadcast %cst_114 : f32 to vector<2x1xf32>
    %154 = arith.subf %153, %152 : vector<2x1xf32>
    %155 = arith.mulf %151, %154 : vector<2x1xf32>
    %156 = vector.broadcast %155 : vector<2x1xf32> to vector<2x10xf32>
    %157 = arith.mulf %148, %156 : vector<2x10xf32>
    %c0_115 = arith.constant 0 : index
    %c0_116 = arith.constant 0 : index
    %158 = vector.load %arg11[%c0_115, %c0_116] : memref<2x10xf32, #tpu.memory_space<vmem>>, vector<2x10xf32>
    tpu.vector_store %arg11[%c0_115, %c0_116], %157 {strides = array<i32>} : memref<2x10xf32, #tpu.memory_space<vmem>>, vector<2x10xf32>,
    return
  }
}

</mosaic_0001>

<llo_original>
// kernel: _lambda_.1
$region0: #{_lambda_.1}
  #allocation0 [shape = 'u32[]', space=smem, size = 0x4, offset = 0x4, fixed_abs, tag = 'smem constant byte address 0x4 - core index']
  #allocation1 [shape = 'u32[144,128]{1,0:T(1,128)}', space=vmem, size = 0x12000, scoped, tag = 'internal scratch']
  #allocation2 [shape = 'bf16[14,384]{1,0:T(8,128)(2,1)}', space=vmem, size = 0x3000, scoped, tag = 'scratch operand']
  #allocation3 [shape = 'bf16[2,128]{1,0:T(2,128)(2,1)}', space=vmem, size = 0x200, scoped, tag = 'scratch operand']
  %s0 = inlined_call_operand.vmem [shape: f32[2,16,64], index: 0, kind: input, shape index: {}]
  %s1 = inlined_call_operand.vmem [shape: bf16[384,112], index: 1, kind: input, shape index: {}]
  %s2 = inlined_call_operand.vmem [shape: f32[1,112], index: 2, kind: input, shape index: {}]
  %s3 = inlined_call_operand.vmem [shape: bf16[2,7,14], index: 3, kind: input, shape index: {}]
  %s4 = inlined_call_operand.vmem [shape: bf16[384,80], index: 4, kind: input, shape index: {}]
  %s5 = inlined_call_operand.vmem [shape: f32[1,80], index: 5, kind: input, shape index: {}]
  %s6 = inlined_call_operand.vmem [shape: bf16[2,2,5], index: 6, kind: input, shape index: {}]
  %s7 = inlined_call_operand.vmem [shape: bf16[128,32], index: 7, kind: input, shape index: {}]
  %s8 = inlined_call_operand.vmem [shape: f32[1,32], index: 8, kind: input, shape index: {}]
  %s9 = inlined_call_operand.vmem [shape: bf16[32,10], index: 9, kind: input, shape index: {}]
  %s10 = inlined_call_operand.vmem [shape: f32[1,10], index: 10, kind: input, shape index: {}]
  %s11 = inlined_call_operand.hbm [shape: f32[2,10], index: 11, kind: output, shape index: {}]
  %s12 = sld [smem:[#allocation0]]
  $region54: #{_lambda_.1} parent=0
    _
  %s14 = ssub.s32 1, %s12
  %s15 = scalar_select 0, %s14, %s12
  $region1: #{_lambda_.1} parent=0
    #allocation4 [shape = 'u8[1024]{0}', space=vmem, size = 0x400, scoped, tag = 'output window, operand 0, single buffered']
    #allocation5 [shape = 's32[1]{0}', space=sflag, size = 0x4, scoped, tag = 'scoped memory for _lambda_.1']
    %16 = vsyncpa [#allocation5], 0
    // Predicated region
    $region2: #{_lambda_.1} parent=1 // pred_check
      _
    $region3: #{_lambda_.1} parent=1 // pred_check_branch
      %18 = sbr.rel (0) target = $region5
    $region4: #{_lambda_.1} parent=1 // pred_region
      _
    $region5: #{_lambda_.1} parent=1 // pred_fallthru
      _
    // Predicated region
    $region6: #{_lambda_.1} parent=1 // pred_check
      _
    $region7: #{_lambda_.1} parent=1 // pred_check_branch
      %20 = sbr.rel (0) target = $region9
    $region8: #{_lambda_.1} parent=1 // pred_region
      _
    $region9: #{_lambda_.1} parent=1 // pred_fallthru
      _
    // Predicated region
    $region10: #{_lambda_.1} parent=1 // pred_check
      _
    $region11: #{_lambda_.1} parent=1 // pred_check_branch
      %22 = sbr.rel (0) target = $region13
    $region12: #{_lambda_.1} parent=1 // pred_region
      _
    $region13: #{_lambda_.1} parent=1 // pred_fallthru
      _
    // Predicated region
    $region14: #{_lambda_.1} parent=1 // pred_check
      _
    $region15: #{_lambda_.1} parent=1 // pred_check_branch
      %24 = sbr.rel (0) target = $region17
    $region16: #{_lambda_.1} parent=1 // pred_region
      _
    $region17: #{_lambda_.1} parent=1 // pred_fallthru
      _
    // Predicated region
    $region18: #{_lambda_.1} parent=1 // pred_check
      _
    $region19: #{_lambda_.1} parent=1 // pred_check_branch
      %26 = sbr.rel (0) target = $region21
    $region20: #{_lambda_.1} parent=1 // pred_region
      _
    $region21: #{_lambda_.1} parent=1 // pred_fallthru
      _
    // Predicated region
    $region22: #{_lambda_.1} parent=1 // pred_check
      _
    $region23: #{_lambda_.1} parent=1 // pred_check_branch
      %28 = sbr.rel (0) target = $region25
    $region24: #{_lambda_.1} parent=1 // pred_region
      _
    $region25: #{_lambda_.1} parent=1 // pred_fallthru
      _
    // Predicated region
    $region26: #{_lambda_.1} parent=1 // pred_check
      _
    $region27: #{_lambda_.1} parent=1 // pred_check_branch
      %30 = sbr.rel (0) target = $region29
    $region28: #{_lambda_.1} parent=1 // pred_region
      _
    $region29: #{_lambda_.1} parent=1 // pred_fallthru
      _
    // Predicated region
    $region30: #{_lambda_.1} parent=1 // pred_check
      _
    $region31: #{_lambda_.1} parent=1 // pred_check_branch
      %32 = sbr.rel (0) target = $region33
    $region32: #{_lambda_.1} parent=1 // pred_region
      _
    $region33: #{_lambda_.1} parent=1 // pred_fallthru
      _
    // Predicated region
    $region34: #{_lambda_.1} parent=1 // pred_check
      _
    $region35: #{_lambda_.1} parent=1 // pred_check_branch
      %34 = sbr.rel (0) target = $region37
    $region36: #{_lambda_.1} parent=1 // pred_region
      _
    $region37: #{_lambda_.1} parent=1 // pred_fallthru
      _
    // Predicated region
    $region38: #{_lambda_.1} parent=1 // pred_check
      _
    $region39: #{_lambda_.1} parent=1 // pred_check_branch
      %36 = sbr.rel (0) target = $region41
    $region40: #{_lambda_.1} parent=1 // pred_region
      _
    $region41: #{_lambda_.1} parent=1 // pred_fallthru
      _
    // Predicated region
    $region42: #{_lambda_.1} parent=1 // pred_check
      _
    $region43: #{_lambda_.1} parent=1 // pred_check_branch
      %38 = sbr.rel (0) target = $region45
    $region44: #{_lambda_.1} parent=1 // pred_region
      _
    $region45: #{_lambda_.1} parent=1 // pred_fallthru
      _
    %40 = vst [vmem:[#allocation2] sm:$0xff] 0
    %41 = vst [vmem:[#allocation2 + $0x8] sm:$0xf] 0
    %42 = vst [vmem:[#allocation2 + $0xc] sm:$0x77] 0
    %43 = vst [vmem:[#allocation2 + $0x14] sm:$0x7] 0
    %v44 = vld [vmem:[%s0] sm:$0xff]
    %v45 = vld [vmem:[%s0 + $0x8] sm:$0xff]
    %v46 = vpack.c.bf16 %v45, %v44
    %v48 = vunpack.c.l.b16 %v46
    %v49 = vunpack.c.h.b16 %v46
    %v50 = vpack.c.b16 %v48, %v48
    %v51 = vpack.c.b16 %v49, %v49
    %vm54 = vcmask 519168
    %55 = vst.msk [vmem:[#allocation2] sm:$0xf] %vm54, %v50
    %vm56 = vcmask 518144
    %57 = vst.msk [vmem:[#allocation2 + $0xc] sm:$0x7] %vm56, %v51
    %vm58 = vsmask.f32 3328
    %vm59 = vsmask.f32 7440
    %vm60 = vmor %vm58, %vm59
    %v62 = vshrl.u32 %v50, 16
    %v64 = vrot.slane %v62, 4
    %v65 = vshll.u32 %v50, 16
    %v67 = vrot.slane %v65, 5
    %v68 = vor.u32 %v64, %v67
    %v69 = vrot.slane %v68, 4
    %v71 = vshll.u32 %v51, 16
    %v73 = vrot.slane %v71, 5
    %v74 = vsel %vm60, %v69, %v73
    %v75 = vshrl.u32 %v51, 16
    %v77 = vrot.slane %v75, 4
    %v78 = vor.u32 %v77, %v73
    %v79 = vrot.slane %v78, 4
    %82 = vst.msk [vmem:[#allocation2 + $0x4] sm:$0xf] %vm54, %v74
    %83 = vst.msk [vmem:[#allocation2 + $0x10] sm:$0x7] %vm56, %v79
    %vm84 = vcmask 1042432
    %vm85 = vcmask 1046532
    %vm86 = vmor %vm84, %vm85
    %v87 = vrot.slane %v50, 5
    %v88 = vrot.slane %v87, 4
    %v89 = vrot.slane %v51, 5
    %v90 = vsel %vm86, %v88, %v89
    %v91 = vrot.slane %v89, 4
    %94 = vst.msk [vmem:[#allocation2 + $0x8] sm:$0xf] %vm54, %v90
    %95 = vst.msk [vmem:[#allocation2 + $0x14] sm:$0x7] %vm56, %v91
    %v96 = vld [vmem:[#allocation2] sm:$0xff]
    %v97 = vld [vmem:[#allocation2 + $0x8] sm:$0xf]
    %v98 = vld [vmem:[#allocation2 + $0xc] sm:$0x77]
    %v99 = vld [vmem:[#allocation2 + $0x14] sm:$0x7]
    %v100 = vld [vmem:[%s1] sm:$0xf]
    %v101 = vld [vmem:[%s1 + $0x4] sm:$0xf]
    %v102 = vld [vmem:[%s1 + $0x8] sm:$0xf]
    %v103 = vld [vmem:[%s1 + $0xc] sm:$0xf]
    %v104 = vld [vmem:[%s1 + $0x10] sm:$0xf]
    %v105 = vld [vmem:[%s1 + $0x14] sm:$0xf]
    %v106 = vld [vmem:[%s1 + $0x18] sm:$0xf]
    %v107 = vld [vmem:[%s1 + $0x1c] sm:$0xf]
    %v108 = vld [vmem:[%s1 + $0x20] sm:$0xf]
    %v109 = vld [vmem:[%s1 + $0x24] sm:$0xf]
    %v110 = vld [vmem:[%s1 + $0x28] sm:$0xf]
    %v111 = vld [vmem:[%s1 + $0x2c] sm:$0xf]
    %v112 = vld [vmem:[%s1 + $0x30] sm:$0xf]
    %v113 = vld [vmem:[%s1 + $0x34] sm:$0xf]
    %v114 = vld [vmem:[%s1 + $0x38] sm:$0xf]
    %v115 = vld [vmem:[%s1 + $0x3c] sm:$0xf]
    %v116 = vld [vmem:[%s1 + $0x40] sm:$0xf]
    %v117 = vld [vmem:[%s1 + $0x44] sm:$0xf]
    %v118 = vld [vmem:[%s1 + $0x48] sm:$0xf]
    %v119 = vld [vmem:[%s1 + $0x4c] sm:$0xf]
    %v120 = vld [vmem:[%s1 + $0x50] sm:$0xf]
    %v121 = vld [vmem:[%s1 + $0x54] sm:$0xf]
    %v122 = vld [vmem:[%s1 + $0x58] sm:$0xf]
    %v123 = vld [vmem:[%s1 + $0x5c] sm:$0xf]
    %v124 = vld [vmem:[%s1 + $0x60] sm:$0xf]
    %v125 = vld [vmem:[%s1 + $0x64] sm:$0xf]
    %v126 = vld [vmem:[%s1 + $0x68] sm:$0xf]
    %v127 = vld [vmem:[%s1 + $0x6c] sm:$0xf]
    %v128 = vld [vmem:[%s1 + $0x70] sm:$0xf]
    %v129 = vld [vmem:[%s1 + $0x74] sm:$0xf]
    %v130 = vld [vmem:[%s1 + $0x78] sm:$0xf]
    %v131 = vld [vmem:[%s1 + $0x7c] sm:$0xf]
    %v132 = vld [vmem:[%s1 + $0x80] sm:$0xf]
    %v133 = vld [vmem:[%s1 + $0x84] sm:$0xf]
    %v134 = vld [vmem:[%s1 + $0x88] sm:$0xf]
    %v135 = vld [vmem:[%s1 + $0x8c] sm:$0xf]
    %v136 = vld [vmem:[%s1 + $0x90] sm:$0xf]
    %v137 = vld [vmem:[%s1 + $0x94] sm:$0xf]
    %v138 = vld [vmem:[%s1 + $0x98] sm:$0xf]
    %v139 = vld [vmem:[%s1 + $0x9c] sm:$0xf]
    %v140 = vld [vmem:[%s1 + $0xa0] sm:$0xf]
    %v141 = vld [vmem:[%s1 + $0xa4] sm:$0xf]
    %v142 = vld [vmem:[%s1 + $0xa8] sm:$0xf]
    %v143 = vld [vmem:[%s1 + $0xac] sm:$0xf]
    %v144 = vld [vmem:[%s1 + $0xb0] sm:$0xf]
    %v145 = vld [vmem:[%s1 + $0xb4] sm:$0xf]
    %v146 = vld [vmem:[%s1 + $0xb8] sm:$0xf]
    %v147 = vld [vmem:[%s1 + $0xbc] sm:$0xf]
    %v148 = vld [vmem:[%s2] sm:$0x1]
    %v150 = vlaneseq
    %v151 = vshrl.u32 %v150, 7
    %v152 = vsub.s32 0, %v151
    %v153 = vrot.slane %v148, %v152
    %v159 = vunpack.c.l.b16 %v96
    %v160 = vunpack.c.h.b16 %v96
    %v161 = vunpack.c.l.b16 %v97
    %v162 = vunpack.c.l.b16 %v98
    %v163 = vunpack.c.h.b16 %v98
    %v164 = vunpack.c.l.b16 %v99
    %v165 = vpack.c.b16 %v162, %v159
    %v166 = vpack.c.b16 %v163, %v160
    %v167 = vpack.c.b16 %v164, %v161
    %v219 = vunpack.c.l.b16 %v100
    %v220 = vunpack.c.l.b16 %v101
    %v221 = vunpack.c.l.b16 %v102
    %v222 = vunpack.c.l.b16 %v103
    %v223 = vunpack.c.l.b16 %v104
    %v224 = vunpack.c.l.b16 %v105
    %v225 = vunpack.c.l.b16 %v106
    %v226 = vunpack.c.l.b16 %v107
    %v227 = vunpack.c.l.b16 %v108
    %v228 = vunpack.c.l.b16 %v109
    %v229 = vunpack.c.l.b16 %v110
    %v230 = vunpack.c.l.b16 %v111
    %v231 = vunpack.c.l.b16 %v112
    %v232 = vunpack.c.l.b16 %v113
    %v233 = vunpack.c.l.b16 %v114
    %v234 = vunpack.c.l.b16 %v115
    %v235 = vunpack.c.l.b16 %v116
    %v236 = vunpack.c.l.b16 %v117
    %v237 = vunpack.c.l.b16 %v118
    %v238 = vunpack.c.l.b16 %v119
    %v239 = vunpack.c.l.b16 %v120
    %v240 = vunpack.c.l.b16 %v121
    %v241 = vunpack.c.l.b16 %v122
    %v242 = vunpack.c.l.b16 %v123
    %v243 = vunpack.c.l.b16 %v124
    %v244 = vunpack.c.l.b16 %v125
    %v245 = vunpack.c.l.b16 %v126
    %v246 = vunpack.c.l.b16 %v127
    %v247 = vunpack.c.l.b16 %v128
    %v248 = vunpack.c.l.b16 %v129
    %v249 = vunpack.c.l.b16 %v130
    %v250 = vunpack.c.l.b16 %v131
    %v251 = vunpack.c.l.b16 %v132
    %v252 = vunpack.c.l.b16 %v133
    %v253 = vunpack.c.l.b16 %v134
    %v254 = vunpack.c.l.b16 %v135
    %v255 = vunpack.c.l.b16 %v136
    %v256 = vunpack.c.l.b16 %v137
    %v257 = vunpack.c.l.b16 %v138
    %v258 = vunpack.c.l.b16 %v139
    %v259 = vunpack.c.l.b16 %v140
    %v260 = vunpack.c.l.b16 %v141
    %v261 = vunpack.c.l.b16 %v142
    %v262 = vunpack.c.l.b16 %v143
    %v263 = vunpack.c.l.b16 %v144
    %v264 = vunpack.c.l.b16 %v145
    %v265 = vunpack.c.l.b16 %v146
    %v266 = vunpack.c.l.b16 %v147
    %v267 = vpack.c.b16 %v220, %v219
    %v268 = vpack.c.b16 %v222, %v221
    %v269 = vpack.c.b16 %v224, %v223
    %v270 = vpack.c.b16 %v226, %v225
    %v271 = vpack.c.b16 %v228, %v227
    %v272 = vpack.c.b16 %v230, %v229
    %v273 = vpack.c.b16 %v232, %v231
    %v274 = vpack.c.b16 %v234, %v233
    %v275 = vpack.c.b16 %v236, %v235
    %v276 = vpack.c.b16 %v238, %v237
    %v277 = vpack.c.b16 %v240, %v239
    %v278 = vpack.c.b16 %v242, %v241
    %v279 = vpack.c.b16 %v244, %v243
    %v280 = vpack.c.b16 %v246, %v245
    %v281 = vpack.c.b16 %v248, %v247
    %v282 = vpack.c.b16 %v250, %v249
    %v283 = vpack.c.b16 %v252, %v251
    %v284 = vpack.c.b16 %v254, %v253
    %v285 = vpack.c.b16 %v256, %v255
    %v286 = vpack.c.b16 %v258, %v257
    %v287 = vpack.c.b16 %v260, %v259
    %v288 = vpack.c.b16 %v262, %v261
    %v289 = vpack.c.b16 %v264, %v263
    %v290 = vpack.c.b16 %v266, %v265
    %315 = vmatprep.subr.bf16.mxu0 0
    %316 = vmatpush1.bf16.msra.mxu0 %v274
    %317 = vmatprep.subr.bf16.mxu0 0
    %318 = vmatpush1.bf16.msra.mxu0 %v273
    %319 = vmatprep.subr.bf16.mxu0 0
    %320 = vmatpush1.bf16.msra.mxu0 %v272
    %321 = vmatprep.subr.bf16.mxu0 0
    %322 = vmatpush1.bf16.msra.mxu0 %v271
    %323 = vmatprep.subr.bf16.mxu0 0
    %324 = vmatpush1.bf16.msra.mxu0 %v270
    %325 = vmatprep.subr.bf16.mxu0 0
    %326 = vmatpush1.bf16.msra.mxu0 %v269
    %327 = vmatprep.subr.bf16.mxu0 0
    %328 = vmatpush1.bf16.msra.mxu0 %v268
    %329 = vmatprep.subr.bf16.mxu0 0
    %330 = vmatpush1.bf16.msra.mxu0 %v267
    %331 = vmatprep.subr.bf16.mxu0 0
    %332 = vmatpush2.bf16.msra.mxu0 %v282
    %333 = vmatprep.subr.bf16.mxu0 0
    %334 = vmatpush2.bf16.msra.mxu0 %v281
    %335 = vmatprep.subr.bf16.mxu0 0
    %336 = vmatpush2.bf16.msra.mxu0 %v280
    %337 = vmatprep.subr.bf16.mxu0 0
    %338 = vmatpush2.bf16.msra.mxu0 %v279
    %339 = vmatprep.subr.bf16.mxu0 0
    %340 = vmatpush2.bf16.msra.mxu0 %v278
    %341 = vmatprep.subr.bf16.mxu0 0
    %342 = vmatpush2.bf16.msra.mxu0 %v277
    %343 = vmatprep.subr.bf16.mxu0 0
    %344 = vmatpush2.bf16.msra.mxu0 %v276
    %345 = vmatprep.subr.bf16.mxu0 0
    %346 = vmatpush2.bf16.msra.mxu0 %v275
    %347 = vmatprep.mubr.bf16.mxu0 %v166
    %348 = vmatmul.mubr.bf16.gmra.mxu0 %v165
    %v349 = vpop.f32.mrf.mxu0
    %v350 = vadd.f32 %v153, %v349
    %v351 = vpop.f32.mrf.mxu0
    %v352 = vpop.f32.mrf.mxu0
    %v353 = vadd.f32 %v153, %v352
    %v354 = vpop.f32.mrf.mxu0
    %355 = vdwg.mxu0
    %356 = vmatprep.subr.bf16.mxu0 0
    %357 = vmatpush1.bf16.msra.mxu0 %v290
    %358 = vmatprep.subr.bf16.mxu0 0
    %359 = vmatpush1.bf16.msra.mxu0 %v289
    %360 = vmatprep.subr.bf16.mxu0 0
    %361 = vmatpush1.bf16.msra.mxu0 %v288
    %362 = vmatprep.subr.bf16.mxu0 0
    %363 = vmatpush1.bf16.msra.mxu0 %v287
    %364 = vmatprep.subr.bf16.mxu0 0
    %365 = vmatpush1.bf16.msra.mxu0 %v286
    %366 = vmatprep.subr.bf16.mxu0 0
    %367 = vmatpush1.bf16.msra.mxu0 %v285
    %368 = vmatprep.subr.bf16.mxu0 0
    %369 = vmatpush1.bf16.msra.mxu0 %v284
    %370 = vmatprep.subr.bf16.mxu0 0
    %371 = vmatpush1.bf16.msra.mxu0 %v283
    %372 = vmatprep.subr.bf16.mxu0 0
    %373 = vmatpush2.bf16.msra.mxu0 0
    %374 = vmatprep.subr.bf16.mxu0 0
    %375 = vmatpush2.bf16.msra.mxu0 0
    %376 = vmatprep.subr.bf16.mxu0 0
    %377 = vmatpush2.bf16.msra.mxu0 0
    %378 = vmatprep.subr.bf16.mxu0 0
    %379 = vmatpush2.bf16.msra.mxu0 0
    %380 = vmatprep.subr.bf16.mxu0 0
    %381 = vmatpush2.bf16.msra.mxu0 0
    %382 = vmatprep.subr.bf16.mxu0 0
    %383 = vmatpush2.bf16.msra.mxu0 0
    %384 = vmatprep.subr.bf16.mxu0 0
    %385 = vmatpush2.bf16.msra.mxu0 0
    %386 = vmatprep.subr.bf16.mxu0 0
    %387 = vmatpush2.bf16.msra.mxu0 0
    %388 = vmatprep.mubr.bf16.mxu0 0
    %389 = vmatmul.mubr.bf16.gmra.mxu0 %v167
    %v390 = vpop.f32.mrf.mxu0
    %v391 = vadd.f32 %v350, %v390
    %v392 = vpop.f32.mrf.mxu0
    %v393 = vpop.f32.mrf.mxu0
    %v394 = vadd.f32 %v353, %v393
    %v395 = vpop.f32.mrf.mxu0
    %396 = vdwg.mxu0
    %v397 = vmax.f32 %v391, 0.0
    %v398 = vmax.f32 %v394, 0.0
    %v399 = vpack.c.bf16 %v398, %v397
    %v400 = vld [vmem:[%s3] sm:$0xf]
    %vm401 = vcmask 113664
    %v403 = vsel %vm401, %v400, 0
    %vm405 = vcmask 1046528
    %v407 = vsel %vm405, %v399, 0
    %409 = vmatprep.subr.bf16.mxu0 0
    %410 = vmatpush1.bf16.msra.mxu0 0
    %411 = vmatprep.subr.bf16.mxu0 0
    %412 = vmatpush1.bf16.msra.mxu0 0
    %413 = vmatprep.subr.bf16.mxu0 0
    %414 = vmatpush1.bf16.msra.mxu0 0
    %415 = vmatprep.subr.bf16.mxu0 0
    %416 = vmatpush1.bf16.msra.mxu0 0
    %417 = vmatprep.subr.bf16.mxu0 0
    %418 = vmatpush1.bf16.msra.mxu0 0
    %419 = vmatprep.subr.bf16.mxu0 0
    %420 = vmatpush1.bf16.msra.mxu0 0
    %421 = vmatprep.subr.bf16.mxu0 0
    %422 = vmatpush1.bf16.msra.mxu0 0
    %423 = vmatprep.subr.bf16.mxu0 0
    %424 = vmatpush1.bf16.msra.mxu0 %v407
    %425 = vmatprep.subr.bf16.mxu0 0
    %426 = vmatpush2.bf16.msra.mxu0 0
    %427 = vmatprep.subr.bf16.mxu0 0
    %428 = vmatpush2.bf16.msra.mxu0 0
    %429 = vmatprep.subr.bf16.mxu0 0
    %430 = vmatpush2.bf16.msra.mxu0 0
    %431 = vmatprep.subr.bf16.mxu0 0
    %432 = vmatpush2.bf16.msra.mxu0 0
    %433 = vmatprep.subr.bf16.mxu0 0
    %434 = vmatpush2.bf16.msra.mxu0 0
    %435 = vmatprep.subr.bf16.mxu0 0
    %436 = vmatpush2.bf16.msra.mxu0 0
    %437 = vmatprep.subr.bf16.mxu0 0
    %438 = vmatpush2.bf16.msra.mxu0 0
    %439 = vmatprep.subr.bf16.mxu0 0
    %440 = vmatpush2.bf16.msra.mxu0 0
    %441 = vmatprep.mubr.bf16.mxu0 0
    %442 = vmatmul.mubr.bf16.gmra.mxu0 %v403
    %v443 = vpop.f32.mrf.mxu0
    %v444 = vadd.f32 0.0, %v443
    %v445 = vpop.f32.mrf.mxu0
    %v446 = vpop.f32.mrf.mxu0
    %v447 = vpop.f32.mrf.mxu0
    %448 = vdwg.mxu0
    %s449 = scalar_lea.vmem %s3, 4
    %v450 = vld [vmem:[%s449] sm:$0xf]
    %v452 = vsel %vm401, %v450, 0
    %454 = vmatprep.subr.bf16.mxu0 0
    %455 = vmatpush1.bf16.msra.mxu0 0
    %456 = vmatprep.subr.bf16.mxu0 0
    %457 = vmatpush1.bf16.msra.mxu0 0
    %458 = vmatprep.subr.bf16.mxu0 0
    %459 = vmatpush1.bf16.msra.mxu0 0
    %460 = vmatprep.subr.bf16.mxu0 0
    %461 = vmatpush1.bf16.msra.mxu0 0
    %462 = vmatprep.subr.bf16.mxu0 0
    %463 = vmatpush1.bf16.msra.mxu0 0
    %464 = vmatprep.subr.bf16.mxu0 0
    %465 = vmatpush1.bf16.msra.mxu0 0
    %466 = vmatprep.subr.bf16.mxu0 0
    %467 = vmatpush1.bf16.msra.mxu0 0
    %468 = vmatprep.subr.bf16.mxu0 0
    %469 = vmatpush1.bf16.msra.mxu0 %v407
    %470 = vmatprep.subr.bf16.mxu0 0
    %471 = vmatpush2.bf16.msra.mxu0 0
    %472 = vmatprep.subr.bf16.mxu0 0
    %473 = vmatpush2.bf16.msra.mxu0 0
    %474 = vmatprep.subr.bf16.mxu0 0
    %475 = vmatpush2.bf16.msra.mxu0 0
    %476 = vmatprep.subr.bf16.mxu0 0
    %477 = vmatpush2.bf16.msra.mxu0 0
    %478 = vmatprep.subr.bf16.mxu0 0
    %479 = vmatpush2.bf16.msra.mxu0 0
    %480 = vmatprep.subr.bf16.mxu0 0
    %481 = vmatpush2.bf16.msra.mxu0 0
    %482 = vmatprep.subr.bf16.mxu0 0
    %483 = vmatpush2.bf16.msra.mxu0 0
    %484 = vmatprep.subr.bf16.mxu0 0
    %485 = vmatpush2.bf16.msra.mxu0 0
    %486 = vmatprep.mubr.bf16.mxu0 0
    %487 = vmatmul.mubr.bf16.gmra.mxu0 %v452
    %v488 = vpop.f32.mrf.mxu0
    %v489 = vadd.f32 0.0, %v488
    %v490 = vpop.f32.mrf.mxu0
    %v491 = vpop.f32.mrf.mxu0
    %v492 = vpop.f32.mrf.mxu0
    %493 = vdwg.mxu0
    %v494 = vmax.f32 %v444, %v489
    %496 = vrot.lane.b32.xlu0 %v494, 120
    %v497 = vpop.permute.xlu0 %496
    %v499 = vmax.f32 %v494, %v497
    %v500 = vpack.c.bf16 %v499, %v499
    %vm501 = vcmask 845824
    %vm502 = vsmask.f32 2304
    %vm503 = vmand %vm501, %vm502
    %v504 = vld [vmem:[#allocation2] sm:$0x7]
    %v505 = vsel %vm503, %v500, %v504
    %506 = vst [vmem:[#allocation2] sm:$0x7] %v505
    %v508 = vunpack.c.l.b16 %v500
    %v509 = vpack.c.b16 %v508, %v508
    %v511 = vshrl.u32 %v509, 16
    %v513 = vrot.slane %v511, 4
    %v514 = vshll.u32 %v509, 16
    %v516 = vrot.slane %v514, 5
    %v517 = vor.u32 %v513, %v516
    %v518 = vrot.slane %v517, 4
    %v520 = vld [vmem:[#allocation2 + $0x4] sm:$0x7]
    %v521 = vsel %vm503, %v518, %v520
    %522 = vst [vmem:[#allocation2 + $0x4] sm:$0x7] %v521
    %v523 = vrot.slane %v509, 5
    %v524 = vrot.slane %v523, 4
    %v526 = vld [vmem:[#allocation2 + $0x8] sm:$0x7]
    %v527 = vsel %vm503, %v524, %v526
    %528 = vst [vmem:[#allocation2 + $0x8] sm:$0x7] %v527
    %v529 = vld [vmem:[#allocation2] sm:$0x77]
    %v530 = vld [vmem:[#allocation2 + $0x8] sm:$0x7]
    %v531 = vld [vmem:[%s4] sm:$0xf]
    %v532 = vld [vmem:[%s4 + $0x4] sm:$0xf]
    %v533 = vld [vmem:[%s4 + $0x8] sm:$0xf]
    %v534 = vld [vmem:[%s4 + $0xc] sm:$0xf]
    %v535 = vld [vmem:[%s4 + $0x10] sm:$0xf]
    %v536 = vld [vmem:[%s4 + $0x14] sm:$0xf]
    %v537 = vld [vmem:[%s4 + $0x18] sm:$0xf]
    %v538 = vld [vmem:[%s4 + $0x1c] sm:$0xf]
    %v539 = vld [vmem:[%s4 + $0x20] sm:$0xf]
    %v540 = vld [vmem:[%s4 + $0x24] sm:$0xf]
    %v541 = vld [vmem:[%s4 + $0x28] sm:$0xf]
    %v542 = vld [vmem:[%s4 + $0x2c] sm:$0xf]
    %v543 = vld [vmem:[%s4 + $0x30] sm:$0xf]
    %v544 = vld [vmem:[%s4 + $0x34] sm:$0xf]
    %v545 = vld [vmem:[%s4 + $0x38] sm:$0xf]
    %v546 = vld [vmem:[%s4 + $0x3c] sm:$0xf]
    %v547 = vld [vmem:[%s4 + $0x40] sm:$0xf]
    %v548 = vld [vmem:[%s4 + $0x44] sm:$0xf]
    %v549 = vld [vmem:[%s4 + $0x48] sm:$0xf]
    %v550 = vld [vmem:[%s4 + $0x4c] sm:$0xf]
    %v551 = vld [vmem:[%s4 + $0x50] sm:$0xf]
    %v552 = vld [vmem:[%s4 + $0x54] sm:$0xf]
    %v553 = vld [vmem:[%s4 + $0x58] sm:$0xf]
    %v554 = vld [vmem:[%s4 + $0x5c] sm:$0xf]
    %v555 = vld [vmem:[%s4 + $0x60] sm:$0xf]
    %v556 = vld [vmem:[%s4 + $0x64] sm:$0xf]
    %v557 = vld [vmem:[%s4 + $0x68] sm:$0xf]
    %v558 = vld [vmem:[%s4 + $0x6c] sm:$0xf]
    %v559 = vld [vmem:[%s4 + $0x70] sm:$0xf]
    %v560 = vld [vmem:[%s4 + $0x74] sm:$0xf]
    %v561 = vld [vmem:[%s4 + $0x78] sm:$0xf]
    %v562 = vld [vmem:[%s4 + $0x7c] sm:$0xf]
    %v563 = vld [vmem:[%s4 + $0x80] sm:$0xf]
    %v564 = vld [vmem:[%s4 + $0x84] sm:$0xf]
    %v565 = vld [vmem:[%s4 + $0x88] sm:$0xf]
    %v566 = vld [vmem:[%s4 + $0x8c] sm:$0xf]
    %v567 = vld [vmem:[%s4 + $0x90] sm:$0xf]
    %v568 = vld [vmem:[%s4 + $0x94] sm:$0xf]
    %v569 = vld [vmem:[%s4 + $0x98] sm:$0xf]
    %v570 = vld [vmem:[%s4 + $0x9c] sm:$0xf]
    %v571 = vld [vmem:[%s4 + $0xa0] sm:$0xf]
    %v572 = vld [vmem:[%s4 + $0xa4] sm:$0xf]
    %v573 = vld [vmem:[%s4 + $0xa8] sm:$0xf]
    %v574 = vld [vmem:[%s4 + $0xac] sm:$0xf]
    %v575 = vld [vmem:[%s4 + $0xb0] sm:$0xf]
    %v576 = vld [vmem:[%s4 + $0xb4] sm:$0xf]
    %v577 = vld [vmem:[%s4 + $0xb8] sm:$0xf]
    %v578 = vld [vmem:[%s4 + $0xbc] sm:$0xf]
    %v579 = vld [vmem:[%s5] sm:$0x1]
    %v581 = vlaneseq
    %v582 = vshrl.u32 %v581, 7
    %v583 = vsub.s32 0, %v582
    %v584 = vrot.slane %v579, %v583
    %v588 = vunpack.c.l.b16 %v529
    %v589 = vunpack.c.h.b16 %v529
    %v590 = vunpack.c.l.b16 %v530
    %v591 = vpack.c.b16 %v588, %v588
    %v592 = vpack.c.b16 %v589, %v589
    %v593 = vpack.c.b16 %v590, %v590
    %v645 = vunpack.c.l.b16 %v531
    %v646 = vunpack.c.l.b16 %v532
    %v647 = vunpack.c.l.b16 %v533
    %v648 = vunpack.c.l.b16 %v534
    %v649 = vunpack.c.l.b16 %v535
    %v650 = vunpack.c.l.b16 %v536
    %v651 = vunpack.c.l.b16 %v537
    %v652 = vunpack.c.l.b16 %v538
    %v653 = vunpack.c.l.b16 %v539
    %v654 = vunpack.c.l.b16 %v540
    %v655 = vunpack.c.l.b16 %v541
    %v656 = vunpack.c.l.b16 %v542
    %v657 = vunpack.c.l.b16 %v543
    %v658 = vunpack.c.l.b16 %v544
    %v659 = vunpack.c.l.b16 %v545
    %v660 = vunpack.c.l.b16 %v546
    %v661 = vunpack.c.l.b16 %v547
    %v662 = vunpack.c.l.b16 %v548
    %v663 = vunpack.c.l.b16 %v549
    %v664 = vunpack.c.l.b16 %v550
    %v665 = vunpack.c.l.b16 %v551
    %v666 = vunpack.c.l.b16 %v552
    %v667 = vunpack.c.l.b16 %v553
    %v668 = vunpack.c.l.b16 %v554
    %v669 = vunpack.c.l.b16 %v555
    %v670 = vunpack.c.l.b16 %v556
    %v671 = vunpack.c.l.b16 %v557
    %v672 = vunpack.c.l.b16 %v558
    %v673 = vunpack.c.l.b16 %v559
    %v674 = vunpack.c.l.b16 %v560
    %v675 = vunpack.c.l.b16 %v561
    %v676 = vunpack.c.l.b16 %v562
    %v677 = vunpack.c.l.b16 %v563
    %v678 = vunpack.c.l.b16 %v564
    %v679 = vunpack.c.l.b16 %v565
    %v680 = vunpack.c.l.b16 %v566
    %v681 = vunpack.c.l.b16 %v567
    %v682 = vunpack.c.l.b16 %v568
    %v683 = vunpack.c.l.b16 %v569
    %v684 = vunpack.c.l.b16 %v570
    %v685 = vunpack.c.l.b16 %v571
    %v686 = vunpack.c.l.b16 %v572
    %v687 = vunpack.c.l.b16 %v573
    %v688 = vunpack.c.l.b16 %v574
    %v689 = vunpack.c.l.b16 %v575
    %v690 = vunpack.c.l.b16 %v576
    %v691 = vunpack.c.l.b16 %v577
    %v692 = vunpack.c.l.b16 %v578
    %v693 = vpack.c.b16 %v646, %v645
    %v694 = vpack.c.b16 %v648, %v647
    %v695 = vpack.c.b16 %v650, %v649
    %v696 = vpack.c.b16 %v652, %v651
    %v697 = vpack.c.b16 %v654, %v653
    %v698 = vpack.c.b16 %v656, %v655
    %v699 = vpack.c.b16 %v658, %v657
    %v700 = vpack.c.b16 %v660, %v659
    %v701 = vpack.c.b16 %v662, %v661
    %v702 = vpack.c.b16 %v664, %v663
    %v703 = vpack.c.b16 %v666, %v665
    %v704 = vpack.c.b16 %v668, %v667
    %v705 = vpack.c.b16 %v670, %v669
    %v706 = vpack.c.b16 %v672, %v671
    %v707 = vpack.c.b16 %v674, %v673
    %v708 = vpack.c.b16 %v676, %v675
    %v709 = vpack.c.b16 %v678, %v677
    %v710 = vpack.c.b16 %v680, %v679
    %v711 = vpack.c.b16 %v682, %v681
    %v712 = vpack.c.b16 %v684, %v683
    %v713 = vpack.c.b16 %v686, %v685
    %v714 = vpack.c.b16 %v688, %v687
    %v715 = vpack.c.b16 %v690, %v689
    %v716 = vpack.c.b16 %v692, %v691
    %741 = vmatprep.subr.bf16.mxu0 0
    %742 = vmatpush1.bf16.msra.mxu0 %v700
    %743 = vmatprep.subr.bf16.mxu0 0
    %744 = vmatpush1.bf16.msra.mxu0 %v699
    %745 = vmatprep.subr.bf16.mxu0 0
    %746 = vmatpush1.bf16.msra.mxu0 %v698
    %747 = vmatprep.subr.bf16.mxu0 0
    %748 = vmatpush1.bf16.msra.mxu0 %v697
    %749 = vmatprep.subr.bf16.mxu0 0
    %750 = vmatpush1.bf16.msra.mxu0 %v696
    %751 = vmatprep.subr.bf16.mxu0 0
    %752 = vmatpush1.bf16.msra.mxu0 %v695
    %753 = vmatprep.subr.bf16.mxu0 0
    %754 = vmatpush1.bf16.msra.mxu0 %v694
    %755 = vmatprep.subr.bf16.mxu0 0
    %756 = vmatpush1.bf16.msra.mxu0 %v693
    %757 = vmatprep.subr.bf16.mxu0 0
    %758 = vmatpush2.bf16.msra.mxu0 %v708
    %759 = vmatprep.subr.bf16.mxu0 0
    %760 = vmatpush2.bf16.msra.mxu0 %v707
    %761 = vmatprep.subr.bf16.mxu0 0
    %762 = vmatpush2.bf16.msra.mxu0 %v706
    %763 = vmatprep.subr.bf16.mxu0 0
    %764 = vmatpush2.bf16.msra.mxu0 %v705
    %765 = vmatprep.subr.bf16.mxu0 0
    %766 = vmatpush2.bf16.msra.mxu0 %v704
    %767 = vmatprep.subr.bf16.mxu0 0
    %768 = vmatpush2.bf16.msra.mxu0 %v703
    %769 = vmatprep.subr.bf16.mxu0 0
    %770 = vmatpush2.bf16.msra.mxu0 %v702
    %771 = vmatprep.subr.bf16.mxu0 0
    %772 = vmatpush2.bf16.msra.mxu0 %v701
    %773 = vmatprep.mubr.bf16.mxu0 %v592
    %774 = vmatmul.mubr.bf16.gmra.mxu0 %v591
    %v775 = vpop.f32.mrf.mxu0
    %v776 = vadd.f32 %v584, %v775
    %v777 = vpop.f32.mrf.mxu0
    %v778 = vpop.f32.mrf.mxu0
    %v779 = vpop.f32.mrf.mxu0
    %780 = vdwg.mxu0
    %781 = vmatprep.subr.bf16.mxu0 0
    %782 = vmatpush1.bf16.msra.mxu0 %v716
    %783 = vmatprep.subr.bf16.mxu0 0
    %784 = vmatpush1.bf16.msra.mxu0 %v715
    %785 = vmatprep.subr.bf16.mxu0 0
    %786 = vmatpush1.bf16.msra.mxu0 %v714
    %787 = vmatprep.subr.bf16.mxu0 0
    %788 = vmatpush1.bf16.msra.mxu0 %v713
    %789 = vmatprep.subr.bf16.mxu0 0
    %790 = vmatpush1.bf16.msra.mxu0 %v712
    %791 = vmatprep.subr.bf16.mxu0 0
    %792 = vmatpush1.bf16.msra.mxu0 %v711
    %793 = vmatprep.subr.bf16.mxu0 0
    %794 = vmatpush1.bf16.msra.mxu0 %v710
    %795 = vmatprep.subr.bf16.mxu0 0
    %796 = vmatpush1.bf16.msra.mxu0 %v709
    %797 = vmatprep.subr.bf16.mxu0 0
    %798 = vmatpush2.bf16.msra.mxu0 0
    %799 = vmatprep.subr.bf16.mxu0 0
    %800 = vmatpush2.bf16.msra.mxu0 0
    %801 = vmatprep.subr.bf16.mxu0 0
    %802 = vmatpush2.bf16.msra.mxu0 0
    %803 = vmatprep.subr.bf16.mxu0 0
    %804 = vmatpush2.bf16.msra.mxu0 0
    %805 = vmatprep.subr.bf16.mxu0 0
    %806 = vmatpush2.bf16.msra.mxu0 0
    %807 = vmatprep.subr.bf16.mxu0 0
    %808 = vmatpush2.bf16.msra.mxu0 0
    %809 = vmatprep.subr.bf16.mxu0 0
    %810 = vmatpush2.bf16.msra.mxu0 0
    %811 = vmatprep.subr.bf16.mxu0 0
    %812 = vmatpush2.bf16.msra.mxu0 0
    %813 = vmatprep.mubr.bf16.mxu0 0
    %814 = vmatmul.mubr.bf16.gmra.mxu0 %v593
    %v815 = vpop.f32.mrf.mxu0
    %v816 = vadd.f32 %v776, %v815
    %v817 = vpop.f32.mrf.mxu0
    %v818 = vpop.f32.mrf.mxu0
    %v819 = vpop.f32.mrf.mxu0
    %820 = vdwg.mxu0
    %v821 = vmax.f32 %v816, 0.0
    %v822 = vpack.c.bf16 %v821, %v821
    %v823 = vld [vmem:[%s6] sm:$0x1]
    %vm824 = vcmask 39936
    %v826 = vsel %vm824, %v823, 0
    %vm828 = vcmask 1041408
    %vm829 = vcmask 1042432
    %v830 = vsel %vm828, 4294967295, 65535
    %v831 = vsel %vm829, %v830, 0
    %v833 = vand.u32 %v822, %v831
    %835 = vmatprep.subr.bf16.mxu0 0
    %836 = vmatpush1.bf16.msra.mxu0 0
    %837 = vmatprep.subr.bf16.mxu0 0
    %838 = vmatpush1.bf16.msra.mxu0 0
    %839 = vmatprep.subr.bf16.mxu0 0
    %840 = vmatpush1.bf16.msra.mxu0 0
    %841 = vmatprep.subr.bf16.mxu0 0
    %842 = vmatpush1.bf16.msra.mxu0 0
    %843 = vmatprep.subr.bf16.mxu0 0
    %844 = vmatpush1.bf16.msra.mxu0 0
    %845 = vmatprep.subr.bf16.mxu0 0
    %846 = vmatpush1.bf16.msra.mxu0 0
    %847 = vmatprep.subr.bf16.mxu0 0
    %848 = vmatpush1.bf16.msra.mxu0 0
    %849 = vmatprep.subr.bf16.mxu0 0
    %850 = vmatpush1.bf16.msra.mxu0 %v833
    %851 = vmatprep.subr.bf16.mxu0 0
    %852 = vmatpush2.bf16.msra.mxu0 0
    %853 = vmatprep.subr.bf16.mxu0 0
    %854 = vmatpush2.bf16.msra.mxu0 0
    %855 = vmatprep.subr.bf16.mxu0 0
    %856 = vmatpush2.bf16.msra.mxu0 0
    %857 = vmatprep.subr.bf16.mxu0 0
    %858 = vmatpush2.bf16.msra.mxu0 0
    %859 = vmatprep.subr.bf16.mxu0 0
    %860 = vmatpush2.bf16.msra.mxu0 0
    %861 = vmatprep.subr.bf16.mxu0 0
    %862 = vmatpush2.bf16.msra.mxu0 0
    %863 = vmatprep.subr.bf16.mxu0 0
    %864 = vmatpush2.bf16.msra.mxu0 0
    %865 = vmatprep.subr.bf16.mxu0 0
    %866 = vmatpush2.bf16.msra.mxu0 0
    %867 = vmatprep.mubr.bf16.mxu0 0
    %868 = vmatmul.mubr.bf16.gmra.mxu0 %v826
    %v869 = vpop.f32.mrf.mxu0
    %v870 = vadd.f32 0.0, %v869
    %v871 = vpop.f32.mrf.mxu0
    %v872 = vpop.f32.mrf.mxu0
    %v873 = vpop.f32.mrf.mxu0
    %874 = vdwg.mxu0
    %s875 = scalar_lea.vmem %s6, 1
    %v876 = vld [vmem:[%s875] sm:$0x1]
    %v878 = vsel %vm824, %v876, 0
    %880 = vmatprep.subr.bf16.mxu0 0
    %881 = vmatpush1.bf16.msra.mxu0 0
    %882 = vmatprep.subr.bf16.mxu0 0
    %883 = vmatpush1.bf16.msra.mxu0 0
    %884 = vmatprep.subr.bf16.mxu0 0
    %885 = vmatpush1.bf16.msra.mxu0 0
    %886 = vmatprep.subr.bf16.mxu0 0
    %887 = vmatpush1.bf16.msra.mxu0 0
    %888 = vmatprep.subr.bf16.mxu0 0
    %889 = vmatpush1.bf16.msra.mxu0 0
    %890 = vmatprep.subr.bf16.mxu0 0
    %891 = vmatpush1.bf16.msra.mxu0 0
    %892 = vmatprep.subr.bf16.mxu0 0
    %893 = vmatpush1.bf16.msra.mxu0 0
    %894 = vmatprep.subr.bf16.mxu0 0
    %895 = vmatpush1.bf16.msra.mxu0 %v833
    %896 = vmatprep.subr.bf16.mxu0 0
    %897 = vmatpush2.bf16.msra.mxu0 0
    %898 = vmatprep.subr.bf16.mxu0 0
    %899 = vmatpush2.bf16.msra.mxu0 0
    %900 = vmatprep.subr.bf16.mxu0 0
    %901 = vmatpush2.bf16.msra.mxu0 0
    %902 = vmatprep.subr.bf16.mxu0 0
    %903 = vmatpush2.bf16.msra.mxu0 0
    %904 = vmatprep.subr.bf16.mxu0 0
    %905 = vmatpush2.bf16.msra.mxu0 0
    %906 = vmatprep.subr.bf16.mxu0 0
    %907 = vmatpush2.bf16.msra.mxu0 0
    %908 = vmatprep.subr.bf16.mxu0 0
    %909 = vmatpush2.bf16.msra.mxu0 0
    %910 = vmatprep.subr.bf16.mxu0 0
    %911 = vmatpush2.bf16.msra.mxu0 0
    %912 = vmatprep.mubr.bf16.mxu0 0
    %913 = vmatmul.mubr.bf16.gmra.mxu0 %v878
    %v914 = vpop.f32.mrf.mxu0
    %v915 = vadd.f32 0.0, %v914
    %v916 = vpop.f32.mrf.mxu0
    %v917 = vpop.f32.mrf.mxu0
    %v918 = vpop.f32.mrf.mxu0
    %919 = vdwg.mxu0
    %v920 = vmax.f32 %v870, %v915
    %922 = vrot.lane.b32.xlu0 %v920, 112
    %v923 = vpop.permute.xlu0 %922
    %v925 = vmax.f32 %v920, %v923
    %v926 = vpack.c.bf16 %v925, %v925
    %vm927 = vcmask 516096
    %vm928 = vsmask.f32 256
    %vm929 = vmand %vm927, %vm928
    %v930 = vld [vmem:[#allocation3] sm:$0x1]
    %v931 = vsel %vm929, %v926, %v930
    %932 = vst [vmem:[#allocation3] sm:$0x1] %v931
    %v935 = vunpack.c.l.s4 1966171168
    %v936 = vunpack.c.0.s8 %v935
    %v937 = vlaneseq
    %v938 = vshrl.u32 %v937, 7
    %v939 = vsub.s32 %v936, %v938
    %v940 = vrot.slane %v926, %v939
    %v942 = vunpack.c.l.s4 1966171168
    %v943 = vunpack.c.0.s8 %v942
    %v944 = vlaneseq
    %v945 = vshrl.u32 %v944, 7
    %v946 = vsub.s32 %v943, %v945
    %v947 = vrot.slane %v940, %v946
    %v949 = vshrl.u32 %v947, 16
    %v951 = vrot.slane %v949, 7
    %v952 = vrot.slane %v951, 1
    %953 = vrot.lane.b32.xlu0 %v952, 64
    %v954 = vpop.permute.xlu0 %953
    %vm956 = vcmask 1040896
    %vm957 = vmand %vm956, %vm928
    %v958 = vld [vmem:[#allocation3] sm:$0x1]
    %v959 = vsel %vm957, %v954, %v958
    %960 = vst [vmem:[#allocation3] sm:$0x1] %v959
    %s961 = scalar_lea.vmem %s0, 16
    %v962 = vld [vmem:[%s961] sm:$0xff]
    %v963 = vld [vmem:[%s961 + $0x8] sm:$0xff]
    %v964 = vpack.c.bf16 %v963, %v962
    %v966 = vunpack.c.l.b16 %v964
    %v967 = vunpack.c.h.b16 %v964
    %v968 = vpack.c.b16 %v966, %v966
    %v969 = vpack.c.b16 %v967, %v967
    %972 = vst.msk [vmem:[#allocation2] sm:$0xf] %vm54, %v968
    %973 = vst.msk [vmem:[#allocation2 + $0xc] sm:$0x7] %vm56, %v969
    %v975 = vshrl.u32 %v968, 16
    %v977 = vrot.slane %v975, 4
    %v978 = vshll.u32 %v968, 16
    %v980 = vrot.slane %v978, 5
    %v981 = vor.u32 %v977, %v980
    %v982 = vrot.slane %v981, 4
    %v984 = vshll.u32 %v969, 16
    %v986 = vrot.slane %v984, 5
    %v987 = vsel %vm60, %v982, %v986
    %v988 = vshrl.u32 %v969, 16
    %v990 = vrot.slane %v988, 4
    %v991 = vor.u32 %v990, %v986
    %v992 = vrot.slane %v991, 4
    %995 = vst.msk [vmem:[#allocation2 + $0x4] sm:$0xf] %vm54, %v987
    %996 = vst.msk [vmem:[#allocation2 + $0x10] sm:$0x7] %vm56, %v992
    %v997 = vrot.slane %v968, 5
    %v998 = vrot.slane %v997, 4
    %v999 = vrot.slane %v969, 5
    %v1000 = vsel %vm86, %v998, %v999
    %v1001 = vrot.slane %v999, 4
    %1004 = vst.msk [vmem:[#allocation2 + $0x8] sm:$0xf] %vm54, %v1000
    %1005 = vst.msk [vmem:[#allocation2 + $0x14] sm:$0x7] %vm56, %v1001
    %v1006 = vld [vmem:[#allocation2] sm:$0xff]
    %v1007 = vld [vmem:[#allocation2 + $0x8] sm:$0xf]
    %v1008 = vld [vmem:[#allocation2 + $0xc] sm:$0x77]
    %v1009 = vld [vmem:[#allocation2 + $0x14] sm:$0x7]
    %v1010 = vld [vmem:[%s1] sm:$0xf]
    %v1011 = vld [vmem:[%s1 + $0x4] sm:$0xf]
    %v1012 = vld [vmem:[%s1 + $0x8] sm:$0xf]
    %v1013 = vld [vmem:[%s1 + $0xc] sm:$0xf]
    %v1014 = vld [vmem:[%s1 + $0x10] sm:$0xf]
    %v1015 = vld [vmem:[%s1 + $0x14] sm:$0xf]
    %v1016 = vld [vmem:[%s1 + $0x18] sm:$0xf]
    %v1017 = vld [vmem:[%s1 + $0x1c] sm:$0xf]
    %v1018 = vld [vmem:[%s1 + $0x20] sm:$0xf]
    %v1019 = vld [vmem:[%s1 + $0x24] sm:$0xf]
    %v1020 = vld [vmem:[%s1 + $0x28] sm:$0xf]
    %v1021 = vld [vmem:[%s1 + $0x2c] sm:$0xf]
    %v1022 = vld [vmem:[%s1 + $0x30] sm:$0xf]
    %v1023 = vld [vmem:[%s1 + $0x34] sm:$0xf]
    %v1024 = vld [vmem:[%s1 + $0x38] sm:$0xf]
    %v1025 = vld [vmem:[%s1 + $0x3c] sm:$0xf]
    %v1026 = vld [vmem:[%s1 + $0x40] sm:$0xf]
    %v1027 = vld [vmem:[%s1 + $0x44] sm:$0xf]
    %v1028 = vld [vmem:[%s1 + $0x48] sm:$0xf]
    %v1029 = vld [vmem:[%s1 + $0x4c] sm:$0xf]
    %v1030 = vld [vmem:[%s1 + $0x50] sm:$0xf]
    %v1031 = vld [vmem:[%s1 + $0x54] sm:$0xf]
    %v1032 = vld [vmem:[%s1 + $0x58] sm:$0xf]
    %v1033 = vld [vmem:[%s1 + $0x5c] sm:$0xf]
    %v1034 = vld [vmem:[%s1 + $0x60] sm:$0xf]
    %v1035 = vld [vmem:[%s1 + $0x64] sm:$0xf]
    %v1036 = vld [vmem:[%s1 + $0x68] sm:$0xf]
    %v1037 = vld [vmem:[%s1 + $0x6c] sm:$0xf]
    %v1038 = vld [vmem:[%s1 + $0x70] sm:$0xf]
    %v1039 = vld [vmem:[%s1 + $0x74] sm:$0xf]
    %v1040 = vld [vmem:[%s1 + $0x78] sm:$0xf]
    %v1041 = vld [vmem:[%s1 + $0x7c] sm:$0xf]
    %v1042 = vld [vmem:[%s1 + $0x80] sm:$0xf]
    %v1043 = vld [vmem:[%s1 + $0x84] sm:$0xf]
    %v1044 = vld [vmem:[%s1 + $0x88] sm:$0xf]
    %v1045 = vld [vmem:[%s1 + $0x8c] sm:$0xf]
    %v1046 = vld [vmem:[%s1 + $0x90] sm:$0xf]
    %v1047 = vld [vmem:[%s1 + $0x94] sm:$0xf]
    %v1048 = vld [vmem:[%s1 + $0x98] sm:$0xf]
    %v1049 = vld [vmem:[%s1 + $0x9c] sm:$0xf]
    %v1050 = vld [vmem:[%s1 + $0xa0] sm:$0xf]
    %v1051 = vld [vmem:[%s1 + $0xa4] sm:$0xf]
    %v1052 = vld [vmem:[%s1 + $0xa8] sm:$0xf]
    %v1053 = vld [vmem:[%s1 + $0xac] sm:$0xf]
    %v1054 = vld [vmem:[%s1 + $0xb0] sm:$0xf]
    %v1055 = vld [vmem:[%s1 + $0xb4] sm:$0xf]
    %v1056 = vld [vmem:[%s1 + $0xb8] sm:$0xf]
    %v1057 = vld [vmem:[%s1 + $0xbc] sm:$0xf]
    %v1058 = vld [vmem:[%s2] sm:$0x1]
    %v1060 = vlaneseq
    %v1061 = vshrl.u32 %v1060, 7
    %v1062 = vsub.s32 0, %v1061
    %v1063 = vrot.slane %v1058, %v1062
    %v1069 = vunpack.c.l.b16 %v1006
    %v1070 = vunpack.c.h.b16 %v1006
    %v1071 = vunpack.c.l.b16 %v1007
    %v1072 = vunpack.c.l.b16 %v1008
    %v1073 = vunpack.c.h.b16 %v1008
    %v1074 = vunpack.c.l.b16 %v1009
    %v1075 = vpack.c.b16 %v1072, %v1069
    %v1076 = vpack.c.b16 %v1073, %v1070
    %v1077 = vpack.c.b16 %v1074, %v1071
    %v1129 = vunpack.c.l.b16 %v1010
    %v1130 = vunpack.c.l.b16 %v1011
    %v1131 = vunpack.c.l.b16 %v1012
    %v1132 = vunpack.c.l.b16 %v1013
    %v1133 = vunpack.c.l.b16 %v1014
    %v1134 = vunpack.c.l.b16 %v1015
    %v1135 = vunpack.c.l.b16 %v1016
    %v1136 = vunpack.c.l.b16 %v1017
    %v1137 = vunpack.c.l.b16 %v1018
    %v1138 = vunpack.c.l.b16 %v1019
    %v1139 = vunpack.c.l.b16 %v1020
    %v1140 = vunpack.c.l.b16 %v1021
    %v1141 = vunpack.c.l.b16 %v1022
    %v1142 = vunpack.c.l.b16 %v1023
    %v1143 = vunpack.c.l.b16 %v1024
    %v1144 = vunpack.c.l.b16 %v1025
    %v1145 = vunpack.c.l.b16 %v1026
    %v1146 = vunpack.c.l.b16 %v1027
    %v1147 = vunpack.c.l.b16 %v1028
    %v1148 = vunpack.c.l.b16 %v1029
    %v1149 = vunpack.c.l.b16 %v1030
    %v1150 = vunpack.c.l.b16 %v1031
    %v1151 = vunpack.c.l.b16 %v1032
    %v1152 = vunpack.c.l.b16 %v1033
    %v1153 = vunpack.c.l.b16 %v1034
    %v1154 = vunpack.c.l.b16 %v1035
    %v1155 = vunpack.c.l.b16 %v1036
    %v1156 = vunpack.c.l.b16 %v1037
    %v1157 = vunpack.c.l.b16 %v1038
    %v1158 = vunpack.c.l.b16 %v1039
    %v1159 = vunpack.c.l.b16 %v1040
    %v1160 = vunpack.c.l.b16 %v1041
    %v1161 = vunpack.c.l.b16 %v1042
    %v1162 = vunpack.c.l.b16 %v1043
    %v1163 = vunpack.c.l.b16 %v1044
    %v1164 = vunpack.c.l.b16 %v1045
    %v1165 = vunpack.c.l.b16 %v1046
    %v1166 = vunpack.c.l.b16 %v1047
    %v1167 = vunpack.c.l.b16 %v1048
    %v1168 = vunpack.c.l.b16 %v1049
    %v1169 = vunpack.c.l.b16 %v1050
    %v1170 = vunpack.c.l.b16 %v1051
    %v1171 = vunpack.c.l.b16 %v1052
    %v1172 = vunpack.c.l.b16 %v1053
    %v1173 = vunpack.c.l.b16 %v1054
    %v1174 = vunpack.c.l.b16 %v1055
    %v1175 = vunpack.c.l.b16 %v1056
    %v1176 = vunpack.c.l.b16 %v1057
    %v1177 = vpack.c.b16 %v1130, %v1129
    %v1178 = vpack.c.b16 %v1132, %v1131
    %v1179 = vpack.c.b16 %v1134, %v1133
    %v1180 = vpack.c.b16 %v1136, %v1135
    %v1181 = vpack.c.b16 %v1138, %v1137
    %v1182 = vpack.c.b16 %v1140, %v1139
    %v1183 = vpack.c.b16 %v1142, %v1141
    %v1184 = vpack.c.b16 %v1144, %v1143
    %v1185 = vpack.c.b16 %v1146, %v1145
    %v1186 = vpack.c.b16 %v1148, %v1147
    %v1187 = vpack.c.b16 %v1150, %v1149
    %v1188 = vpack.c.b16 %v1152, %v1151
    %v1189 = vpack.c.b16 %v1154, %v1153
    %v1190 = vpack.c.b16 %v1156, %v1155
    %v1191 = vpack.c.b16 %v1158, %v1157
    %v1192 = vpack.c.b16 %v1160, %v1159
    %v1193 = vpack.c.b16 %v1162, %v1161
    %v1194 = vpack.c.b16 %v1164, %v1163
    %v1195 = vpack.c.b16 %v1166, %v1165
    %v1196 = vpack.c.b16 %v1168, %v1167
    %v1197 = vpack.c.b16 %v1170, %v1169
    %v1198 = vpack.c.b16 %v1172, %v1171
    %v1199 = vpack.c.b16 %v1174, %v1173
    %v1200 = vpack.c.b16 %v1176, %v1175
    %1225 = vmatprep.subr.bf16.mxu0 0
    %1226 = vmatpush1.bf16.msra.mxu0 %v1184
    %1227 = vmatprep.subr.bf16.mxu0 0
    %1228 = vmatpush1.bf16.msra.mxu0 %v1183
    %1229 = vmatprep.subr.bf16.mxu0 0
    %1230 = vmatpush1.bf16.msra.mxu0 %v1182
    %1231 = vmatprep.subr.bf16.mxu0 0
    %1232 = vmatpush1.bf16.msra.mxu0 %v1181
    %1233 = vmatprep.subr.bf16.mxu0 0
    %1234 = vmatpush1.bf16.msra.mxu0 %v1180
    %1235 = vmatprep.subr.bf16.mxu0 0
    %1236 = vmatpush1.bf16.msra.mxu0 %v1179
    %1237 = vmatprep.subr.bf16.mxu0 0
    %1238 = vmatpush1.bf16.msra.mxu0 %v1178
    %1239 = vmatprep.subr.bf16.mxu0 0
    %1240 = vmatpush1.bf16.msra.mxu0 %v1177
    %1241 = vmatprep.subr.bf16.mxu0 0
    %1242 = vmatpush2.bf16.msra.mxu0 %v1192
    %1243 = vmatprep.subr.bf16.mxu0 0
    %1244 = vmatpush2.bf16.msra.mxu0 %v1191
    %1245 = vmatprep.subr.bf16.mxu0 0
    %1246 = vmatpush2.bf16.msra.mxu0 %v1190
    %1247 = vmatprep.subr.bf16.mxu0 0
    %1248 = vmatpush2.bf16.msra.mxu0 %v1189
    %1249 = vmatprep.subr.bf16.mxu0 0
    %1250 = vmatpush2.bf16.msra.mxu0 %v1188
    %1251 = vmatprep.subr.bf16.mxu0 0
    %1252 = vmatpush2.bf16.msra.mxu0 %v1187
    %1253 = vmatprep.subr.bf16.mxu0 0
    %1254 = vmatpush2.bf16.msra.mxu0 %v1186
    %1255 = vmatprep.subr.bf16.mxu0 0
    %1256 = vmatpush2.bf16.msra.mxu0 %v1185
    %1257 = vmatprep.mubr.bf16.mxu0 %v1076
    %1258 = vmatmul.mubr.bf16.gmra.mxu0 %v1075
    %v1259 = vpop.f32.mrf.mxu0
    %v1260 = vadd.f32 %v1063, %v1259
    %v1261 = vpop.f32.mrf.mxu0
    %v1262 = vpop.f32.mrf.mxu0
    %v1263 = vadd.f32 %v1063, %v1262
    %v1264 = vpop.f32.mrf.mxu0
    %1265 = vdwg.mxu0
    %1266 = vmatprep.subr.bf16.mxu0 0
    %1267 = vmatpush1.bf16.msra.mxu0 %v1200
    %1268 = vmatprep.subr.bf16.mxu0 0
    %1269 = vmatpush1.bf16.msra.mxu0 %v1199
    %1270 = vmatprep.subr.bf16.mxu0 0
    %1271 = vmatpush1.bf16.msra.mxu0 %v1198
    %1272 = vmatprep.subr.bf16.mxu0 0
    %1273 = vmatpush1.bf16.msra.mxu0 %v1197
    %1274 = vmatprep.subr.bf16.mxu0 0
    %1275 = vmatpush1.bf16.msra.mxu0 %v1196
    %1276 = vmatprep.subr.bf16.mxu0 0
    %1277 = vmatpush1.bf16.msra.mxu0 %v1195
    %1278 = vmatprep.subr.bf16.mxu0 0
    %1279 = vmatpush1.bf16.msra.mxu0 %v1194
    %1280 = vmatprep.subr.bf16.mxu0 0
    %1281 = vmatpush1.bf16.msra.mxu0 %v1193
    %1282 = vmatprep.subr.bf16.mxu0 0
    %1283 = vmatpush2.bf16.msra.mxu0 0
    %1284 = vmatprep.subr.bf16.mxu0 0
    %1285 = vmatpush2.bf16.msra.mxu0 0
    %1286 = vmatprep.subr.bf16.mxu0 0
    %1287 = vmatpush2.bf16.msra.mxu0 0
    %1288 = vmatprep.subr.bf16.mxu0 0
    %1289 = vmatpush2.bf16.msra.mxu0 0
    %1290 = vmatprep.subr.bf16.mxu0 0
    %1291 = vmatpush2.bf16.msra.mxu0 0
    %1292 = vmatprep.subr.bf16.mxu0 0
    %1293 = vmatpush2.bf16.msra.mxu0 0
    %1294 = vmatprep.subr.bf16.mxu0 0
    %1295 = vmatpush2.bf16.msra.mxu0 0
    %1296 = vmatprep.subr.bf16.mxu0 0
    %1297 = vmatpush2.bf16.msra.mxu0 0
    %1298 = vmatprep.mubr.bf16.mxu0 0
    %1299 = vmatmul.mubr.bf16.gmra.mxu0 %v1077
    %v1300 = vpop.f32.mrf.mxu0
    %v1301 = vadd.f32 %v1260, %v1300
    %v1302 = vpop.f32.mrf.mxu0
    %v1303 = vpop.f32.mrf.mxu0
    %v1304 = vadd.f32 %v1263, %v1303
    %v1305 = vpop.f32.mrf.mxu0
    %1306 = vdwg.mxu0
    %v1307 = vmax.f32 %v1301, 0.0
    %v1308 = vmax.f32 %v1304, 0.0
    %v1309 = vpack.c.bf16 %v1308, %v1307
    %v1310 = vld [vmem:[%s3] sm:$0xf]
    %v1312 = vsel %vm401, %v1310, 0
    %v1315 = vsel %vm405, %v1309, 0
    %1317 = vmatprep.subr.bf16.mxu0 0
    %1318 = vmatpush1.bf16.msra.mxu0 0
    %1319 = vmatprep.subr.bf16.mxu0 0
    %1320 = vmatpush1.bf16.msra.mxu0 0
    %1321 = vmatprep.subr.bf16.mxu0 0
    %1322 = vmatpush1.bf16.msra.mxu0 0
    %1323 = vmatprep.subr.bf16.mxu0 0
    %1324 = vmatpush1.bf16.msra.mxu0 0
    %1325 = vmatprep.subr.bf16.mxu0 0
    %1326 = vmatpush1.bf16.msra.mxu0 0
    %1327 = vmatprep.subr.bf16.mxu0 0
    %1328 = vmatpush1.bf16.msra.mxu0 0
    %1329 = vmatprep.subr.bf16.mxu0 0
    %1330 = vmatpush1.bf16.msra.mxu0 0
    %1331 = vmatprep.subr.bf16.mxu0 0
    %1332 = vmatpush1.bf16.msra.mxu0 %v1315
    %1333 = vmatprep.subr.bf16.mxu0 0
    %1334 = vmatpush2.bf16.msra.mxu0 0
    %1335 = vmatprep.subr.bf16.mxu0 0
    %1336 = vmatpush2.bf16.msra.mxu0 0
    %1337 = vmatprep.subr.bf16.mxu0 0
    %1338 = vmatpush2.bf16.msra.mxu0 0
    %1339 = vmatprep.subr.bf16.mxu0 0
    %1340 = vmatpush2.bf16.msra.mxu0 0
    %1341 = vmatprep.subr.bf16.mxu0 0
    %1342 = vmatpush2.bf16.msra.mxu0 0
    %1343 = vmatprep.subr.bf16.mxu0 0
    %1344 = vmatpush2.bf16.msra.mxu0 0
    %1345 = vmatprep.subr.bf16.mxu0 0
    %1346 = vmatpush2.bf16.msra.mxu0 0
    %1347 = vmatprep.subr.bf16.mxu0 0
    %1348 = vmatpush2.bf16.msra.mxu0 0
    %1349 = vmatprep.mubr.bf16.mxu0 0
    %1350 = vmatmul.mubr.bf16.gmra.mxu0 %v1312
    %v1351 = vpop.f32.mrf.mxu0
    %v1352 = vadd.f32 0.0, %v1351
    %v1353 = vpop.f32.mrf.mxu0
    %v1354 = vpop.f32.mrf.mxu0
    %v1355 = vpop.f32.mrf.mxu0
    %1356 = vdwg.mxu0
    %v1357 = vld [vmem:[%s449] sm:$0xf]
    %v1359 = vsel %vm401, %v1357, 0
    %1361 = vmatprep.subr.bf16.mxu0 0
    %1362 = vmatpush1.bf16.msra.mxu0 0
    %1363 = vmatprep.subr.bf16.mxu0 0
    %1364 = vmatpush1.bf16.msra.mxu0 0
    %1365 = vmatprep.subr.bf16.mxu0 0
    %1366 = vmatpush1.bf16.msra.mxu0 0
    %1367 = vmatprep.subr.bf16.mxu0 0
    %1368 = vmatpush1.bf16.msra.mxu0 0
    %1369 = vmatprep.subr.bf16.mxu0 0
    %1370 = vmatpush1.bf16.msra.mxu0 0
    %1371 = vmatprep.subr.bf16.mxu0 0
    %1372 = vmatpush1.bf16.msra.mxu0 0
    %1373 = vmatprep.subr.bf16.mxu0 0
    %1374 = vmatpush1.bf16.msra.mxu0 0
    %1375 = vmatprep.subr.bf16.mxu0 0
    %1376 = vmatpush1.bf16.msra.mxu0 %v1315
    %1377 = vmatprep.subr.bf16.mxu0 0
    %1378 = vmatpush2.bf16.msra.mxu0 0
    %1379 = vmatprep.subr.bf16.mxu0 0
    %1380 = vmatpush2.bf16.msra.mxu0 0
    %1381 = vmatprep.subr.bf16.mxu0 0
    %1382 = vmatpush2.bf16.msra.mxu0 0
    %1383 = vmatprep.subr.bf16.mxu0 0
    %1384 = vmatpush2.bf16.msra.mxu0 0
    %1385 = vmatprep.subr.bf16.mxu0 0
    %1386 = vmatpush2.bf16.msra.mxu0 0
    %1387 = vmatprep.subr.bf16.mxu0 0
    %1388 = vmatpush2.bf16.msra.mxu0 0
    %1389 = vmatprep.subr.bf16.mxu0 0
    %1390 = vmatpush2.bf16.msra.mxu0 0
    %1391 = vmatprep.subr.bf16.mxu0 0
    %1392 = vmatpush2.bf16.msra.mxu0 0
    %1393 = vmatprep.mubr.bf16.mxu0 0
    %1394 = vmatmul.mubr.bf16.gmra.mxu0 %v1359
    %v1395 = vpop.f32.mrf.mxu0
    %v1396 = vadd.f32 0.0, %v1395
    %v1397 = vpop.f32.mrf.mxu0
    %v1398 = vpop.f32.mrf.mxu0
    %v1399 = vpop.f32.mrf.mxu0
    %1400 = vdwg.mxu0
    %v1401 = vmax.f32 %v1352, %v1396
    %1403 = vrot.lane.b32.xlu0 %v1401, 120
    %v1404 = vpop.permute.xlu0 %1403
    %v1406 = vmax.f32 %v1401, %v1404
    %v1407 = vpack.c.bf16 %v1406, %v1406
    %v1408 = vld [vmem:[#allocation2] sm:$0x7]
    %v1409 = vsel %vm503, %v1407, %v1408
    %1410 = vst [vmem:[#allocation2] sm:$0x7] %v1409
    %v1412 = vunpack.c.l.b16 %v1407
    %v1413 = vpack.c.b16 %v1412, %v1412
    %v1415 = vshrl.u32 %v1413, 16
    %v1417 = vrot.slane %v1415, 4
    %v1418 = vshll.u32 %v1413, 16
    %v1420 = vrot.slane %v1418, 5
    %v1421 = vor.u32 %v1417, %v1420
    %v1422 = vrot.slane %v1421, 4
    %v1424 = vld [vmem:[#allocation2 + $0x4] sm:$0x7]
    %v1425 = vsel %vm503, %v1422, %v1424
    %1426 = vst [vmem:[#allocation2 + $0x4] sm:$0x7] %v1425
    %v1427 = vrot.slane %v1413, 5
    %v1428 = vrot.slane %v1427, 4
    %v1430 = vld [vmem:[#allocation2 + $0x8] sm:$0x7]
    %v1431 = vsel %vm503, %v1428, %v1430
    %1432 = vst [vmem:[#allocation2 + $0x8] sm:$0x7] %v1431
    %v1433 = vld [vmem:[#allocation2] sm:$0x77]
    %v1434 = vld [vmem:[#allocation2 + $0x8] sm:$0x7]
    %v1435 = vld [vmem:[%s4] sm:$0xf]
    %v1436 = vld [vmem:[%s4 + $0x4] sm:$0xf]
    %v1437 = vld [vmem:[%s4 + $0x8] sm:$0xf]
    %v1438 = vld [vmem:[%s4 + $0xc] sm:$0xf]
    %v1439 = vld [vmem:[%s4 + $0x10] sm:$0xf]
    %v1440 = vld [vmem:[%s4 + $0x14] sm:$0xf]
    %v1441 = vld [vmem:[%s4 + $0x18] sm:$0xf]
    %v1442 = vld [vmem:[%s4 + $0x1c] sm:$0xf]
    %v1443 = vld [vmem:[%s4 + $0x20] sm:$0xf]
    %v1444 = vld [vmem:[%s4 + $0x24] sm:$0xf]
    %v1445 = vld [vmem:[%s4 + $0x28] sm:$0xf]
    %v1446 = vld [vmem:[%s4 + $0x2c] sm:$0xf]
    %v1447 = vld [vmem:[%s4 + $0x30] sm:$0xf]
    %v1448 = vld [vmem:[%s4 + $0x34] sm:$0xf]
    %v1449 = vld [vmem:[%s4 + $0x38] sm:$0xf]
    %v1450 = vld [vmem:[%s4 + $0x3c] sm:$0xf]
    %v1451 = vld [vmem:[%s4 + $0x40] sm:$0xf]
    %v1452 = vld [vmem:[%s4 + $0x44] sm:$0xf]
    %v1453 = vld [vmem:[%s4 + $0x48] sm:$0xf]
    %v1454 = vld [vmem:[%s4 + $0x4c] sm:$0xf]
    %v1455 = vld [vmem:[%s4 + $0x50] sm:$0xf]
    %v1456 = vld [vmem:[%s4 + $0x54] sm:$0xf]
    %v1457 = vld [vmem:[%s4 + $0x58] sm:$0xf]
    %v1458 = vld [vmem:[%s4 + $0x5c] sm:$0xf]
    %v1459 = vld [vmem:[%s4 + $0x60] sm:$0xf]
    %v1460 = vld [vmem:[%s4 + $0x64] sm:$0xf]
    %v1461 = vld [vmem:[%s4 + $0x68] sm:$0xf]
    %v1462 = vld [vmem:[%s4 + $0x6c] sm:$0xf]
    %v1463 = vld [vmem:[%s4 + $0x70] sm:$0xf]
    %v1464 = vld [vmem:[%s4 + $0x74] sm:$0xf]
    %v1465 = vld [vmem:[%s4 + $0x78] sm:$0xf]
    %v1466 = vld [vmem:[%s4 + $0x7c] sm:$0xf]
    %v1467 = vld [vmem:[%s4 + $0x80] sm:$0xf]
    %v1468 = vld [vmem:[%s4 + $0x84] sm:$0xf]
    %v1469 = vld [vmem:[%s4 + $0x88] sm:$0xf]
    %v1470 = vld [vmem:[%s4 + $0x8c] sm:$0xf]
    %v1471 = vld [vmem:[%s4 + $0x90] sm:$0xf]
    %v1472 = vld [vmem:[%s4 + $0x94] sm:$0xf]
    %v1473 = vld [vmem:[%s4 + $0x98] sm:$0xf]
    %v1474 = vld [vmem:[%s4 + $0x9c] sm:$0xf]
    %v1475 = vld [vmem:[%s4 + $0xa0] sm:$0xf]
    %v1476 = vld [vmem:[%s4 + $0xa4] sm:$0xf]
    %v1477 = vld [vmem:[%s4 + $0xa8] sm:$0xf]
    %v1478 = vld [vmem:[%s4 + $0xac] sm:$0xf]
    %v1479 = vld [vmem:[%s4 + $0xb0] sm:$0xf]
    %v1480 = vld [vmem:[%s4 + $0xb4] sm:$0xf]
    %v1481 = vld [vmem:[%s4 + $0xb8] sm:$0xf]
    %v1482 = vld [vmem:[%s4 + $0xbc] sm:$0xf]
    %v1483 = vld [vmem:[%s5] sm:$0x1]
    %v1485 = vlaneseq
    %v1486 = vshrl.u32 %v1485, 7
    %v1487 = vsub.s32 0, %v1486
    %v1488 = vrot.slane %v1483, %v1487
    %v1492 = vunpack.c.l.b16 %v1433
    %v1493 = vunpack.c.h.b16 %v1433
    %v1494 = vunpack.c.l.b16 %v1434
    %v1495 = vpack.c.b16 %v1492, %v1492
    %v1496 = vpack.c.b16 %v1493, %v1493
    %v1497 = vpack.c.b16 %v1494, %v1494
    %v1549 = vunpack.c.l.b16 %v1435
    %v1550 = vunpack.c.l.b16 %v1436
    %v1551 = vunpack.c.l.b16 %v1437
    %v1552 = vunpack.c.l.b16 %v1438
    %v1553 = vunpack.c.l.b16 %v1439
    %v1554 = vunpack.c.l.b16 %v1440
    %v1555 = vunpack.c.l.b16 %v1441
    %v1556 = vunpack.c.l.b16 %v1442
    %v1557 = vunpack.c.l.b16 %v1443
    %v1558 = vunpack.c.l.b16 %v1444
    %v1559 = vunpack.c.l.b16 %v1445
    %v1560 = vunpack.c.l.b16 %v1446
    %v1561 = vunpack.c.l.b16 %v1447
    %v1562 = vunpack.c.l.b16 %v1448
    %v1563 = vunpack.c.l.b16 %v1449
    %v1564 = vunpack.c.l.b16 %v1450
    %v1565 = vunpack.c.l.b16 %v1451
    %v1566 = vunpack.c.l.b16 %v1452
    %v1567 = vunpack.c.l.b16 %v1453
    %v1568 = vunpack.c.l.b16 %v1454
    %v1569 = vunpack.c.l.b16 %v1455
    %v1570 = vunpack.c.l.b16 %v1456
    %v1571 = vunpack.c.l.b16 %v1457
    %v1572 = vunpack.c.l.b16 %v1458
    %v1573 = vunpack.c.l.b16 %v1459
    %v1574 = vunpack.c.l.b16 %v1460
    %v1575 = vunpack.c.l.b16 %v1461
    %v1576 = vunpack.c.l.b16 %v1462
    %v1577 = vunpack.c.l.b16 %v1463
    %v1578 = vunpack.c.l.b16 %v1464
    %v1579 = vunpack.c.l.b16 %v1465
    %v1580 = vunpack.c.l.b16 %v1466
    %v1581 = vunpack.c.l.b16 %v1467
    %v1582 = vunpack.c.l.b16 %v1468
    %v1583 = vunpack.c.l.b16 %v1469
    %v1584 = vunpack.c.l.b16 %v1470
    %v1585 = vunpack.c.l.b16 %v1471
    %v1586 = vunpack.c.l.b16 %v1472
    %v1587 = vunpack.c.l.b16 %v1473
    %v1588 = vunpack.c.l.b16 %v1474
    %v1589 = vunpack.c.l.b16 %v1475
    %v1590 = vunpack.c.l.b16 %v1476
    %v1591 = vunpack.c.l.b16 %v1477
    %v1592 = vunpack.c.l.b16 %v1478
    %v1593 = vunpack.c.l.b16 %v1479
    %v1594 = vunpack.c.l.b16 %v1480
    %v1595 = vunpack.c.l.b16 %v1481
    %v1596 = vunpack.c.l.b16 %v1482
    %v1597 = vpack.c.b16 %v1550, %v1549
    %v1598 = vpack.c.b16 %v1552, %v1551
    %v1599 = vpack.c.b16 %v1554, %v1553
    %v1600 = vpack.c.b16 %v1556, %v1555
    %v1601 = vpack.c.b16 %v1558, %v1557
    %v1602 = vpack.c.b16 %v1560, %v1559
    %v1603 = vpack.c.b16 %v1562, %v1561
    %v1604 = vpack.c.b16 %v1564, %v1563
    %v1605 = vpack.c.b16 %v1566, %v1565
    %v1606 = vpack.c.b16 %v1568, %v1567
    %v1607 = vpack.c.b16 %v1570, %v1569
    %v1608 = vpack.c.b16 %v1572, %v1571
    %v1609 = vpack.c.b16 %v1574, %v1573
    %v1610 = vpack.c.b16 %v1576, %v1575
    %v1611 = vpack.c.b16 %v1578, %v1577
    %v1612 = vpack.c.b16 %v1580, %v1579
    %v1613 = vpack.c.b16 %v1582, %v1581
    %v1614 = vpack.c.b16 %v1584, %v1583
    %v1615 = vpack.c.b16 %v1586, %v1585
    %v1616 = vpack.c.b16 %v1588, %v1587
    %v1617 = vpack.c.b16 %v1590, %v1589
    %v1618 = vpack.c.b16 %v1592, %v1591
    %v1619 = vpack.c.b16 %v1594, %v1593
    %v1620 = vpack.c.b16 %v1596, %v1595
    %1645 = vmatprep.subr.bf16.mxu0 0
    %1646 = vmatpush1.bf16.msra.mxu0 %v1604
    %1647 = vmatprep.subr.bf16.mxu0 0
    %1648 = vmatpush1.bf16.msra.mxu0 %v1603
    %1649 = vmatprep.subr.bf16.mxu0 0
    %1650 = vmatpush1.bf16.msra.mxu0 %v1602
    %1651 = vmatprep.subr.bf16.mxu0 0
    %1652 = vmatpush1.bf16.msra.mxu0 %v1601
    %1653 = vmatprep.subr.bf16.mxu0 0
    %1654 = vmatpush1.bf16.msra.mxu0 %v1600
    %1655 = vmatprep.subr.bf16.mxu0 0
    %1656 = vmatpush1.bf16.msra.mxu0 %v1599
    %1657 = vmatprep.subr.bf16.mxu0 0
    %1658 = vmatpush1.bf16.msra.mxu0 %v1598
    %1659 = vmatprep.subr.bf16.mxu0 0
    %1660 = vmatpush1.bf16.msra.mxu0 %v1597
    %1661 = vmatprep.subr.bf16.mxu0 0
    %1662 = vmatpush2.bf16.msra.mxu0 %v1612
    %1663 = vmatprep.subr.bf16.mxu0 0
    %1664 = vmatpush2.bf16.msra.mxu0 %v1611
    %1665 = vmatprep.subr.bf16.mxu0 0
    %1666 = vmatpush2.bf16.msra.mxu0 %v1610
    %1667 = vmatprep.subr.bf16.mxu0 0
    %1668 = vmatpush2.bf16.msra.mxu0 %v1609
    %1669 = vmatprep.subr.bf16.mxu0 0
    %1670 = vmatpush2.bf16.msra.mxu0 %v1608
    %1671 = vmatprep.subr.bf16.mxu0 0
    %1672 = vmatpush2.bf16.msra.mxu0 %v1607
    %1673 = vmatprep.subr.bf16.mxu0 0
    %1674 = vmatpush2.bf16.msra.mxu0 %v1606
    %1675 = vmatprep.subr.bf16.mxu0 0
    %1676 = vmatpush2.bf16.msra.mxu0 %v1605
    %1677 = vmatprep.mubr.bf16.mxu0 %v1496
    %1678 = vmatmul.mubr.bf16.gmra.mxu0 %v1495
    %v1679 = vpop.f32.mrf.mxu0
    %v1680 = vadd.f32 %v1488, %v1679
    %v1681 = vpop.f32.mrf.mxu0
    %v1682 = vpop.f32.mrf.mxu0
    %v1683 = vpop.f32.mrf.mxu0
    %1684 = vdwg.mxu0
    %1685 = vmatprep.subr.bf16.mxu0 0
    %1686 = vmatpush1.bf16.msra.mxu0 %v1620
    %1687 = vmatprep.subr.bf16.mxu0 0
    %1688 = vmatpush1.bf16.msra.mxu0 %v1619
    %1689 = vmatprep.subr.bf16.mxu0 0
    %1690 = vmatpush1.bf16.msra.mxu0 %v1618
    %1691 = vmatprep.subr.bf16.mxu0 0
    %1692 = vmatpush1.bf16.msra.mxu0 %v1617
    %1693 = vmatprep.subr.bf16.mxu0 0
    %1694 = vmatpush1.bf16.msra.mxu0 %v1616
    %1695 = vmatprep.subr.bf16.mxu0 0
    %1696 = vmatpush1.bf16.msra.mxu0 %v1615
    %1697 = vmatprep.subr.bf16.mxu0 0
    %1698 = vmatpush1.bf16.msra.mxu0 %v1614
    %1699 = vmatprep.subr.bf16.mxu0 0
    %1700 = vmatpush1.bf16.msra.mxu0 %v1613
    %1701 = vmatprep.subr.bf16.mxu0 0
    %1702 = vmatpush2.bf16.msra.mxu0 0
    %1703 = vmatprep.subr.bf16.mxu0 0
    %1704 = vmatpush2.bf16.msra.mxu0 0
    %1705 = vmatprep.subr.bf16.mxu0 0
    %1706 = vmatpush2.bf16.msra.mxu0 0
    %1707 = vmatprep.subr.bf16.mxu0 0
    %1708 = vmatpush2.bf16.msra.mxu0 0
    %1709 = vmatprep.subr.bf16.mxu0 0
    %1710 = vmatpush2.bf16.msra.mxu0 0
    %1711 = vmatprep.subr.bf16.mxu0 0
    %1712 = vmatpush2.bf16.msra.mxu0 0
    %1713 = vmatprep.subr.bf16.mxu0 0
    %1714 = vmatpush2.bf16.msra.mxu0 0
    %1715 = vmatprep.subr.bf16.mxu0 0
    %1716 = vmatpush2.bf16.msra.mxu0 0
    %1717 = vmatprep.mubr.bf16.mxu0 0
    %1718 = vmatmul.mubr.bf16.gmra.mxu0 %v1497
    %v1719 = vpop.f32.mrf.mxu0
    %v1720 = vadd.f32 %v1680, %v1719
    %v1721 = vpop.f32.mrf.mxu0
    %v1722 = vpop.f32.mrf.mxu0
    %v1723 = vpop.f32.mrf.mxu0
    %1724 = vdwg.mxu0
    %v1725 = vmax.f32 %v1720, 0.0
    %v1726 = vpack.c.bf16 %v1725, %v1725
    %v1727 = vld [vmem:[%s6] sm:$0x1]
    %v1729 = vsel %vm824, %v1727, 0
    %v1732 = vand.u32 %v1726, %v831
    %1734 = vmatprep.subr.bf16.mxu0 0
    %1735 = vmatpush1.bf16.msra.mxu0 0
    %1736 = vmatprep.subr.bf16.mxu0 0
    %1737 = vmatpush1.bf16.msra.mxu0 0
    %1738 = vmatprep.subr.bf16.mxu0 0
    %1739 = vmatpush1.bf16.msra.mxu0 0
    %1740 = vmatprep.subr.bf16.mxu0 0
    %1741 = vmatpush1.bf16.msra.mxu0 0
    %1742 = vmatprep.subr.bf16.mxu0 0
    %1743 = vmatpush1.bf16.msra.mxu0 0
    %1744 = vmatprep.subr.bf16.mxu0 0
    %1745 = vmatpush1.bf16.msra.mxu0 0
    %1746 = vmatprep.subr.bf16.mxu0 0
    %1747 = vmatpush1.bf16.msra.mxu0 0
    %1748 = vmatprep.subr.bf16.mxu0 0
    %1749 = vmatpush1.bf16.msra.mxu0 %v1732
    %1750 = vmatprep.subr.bf16.mxu0 0
    %1751 = vmatpush2.bf16.msra.mxu0 0
    %1752 = vmatprep.subr.bf16.mxu0 0
    %1753 = vmatpush2.bf16.msra.mxu0 0
    %1754 = vmatprep.subr.bf16.mxu0 0
    %1755 = vmatpush2.bf16.msra.mxu0 0
    %1756 = vmatprep.subr.bf16.mxu0 0
    %1757 = vmatpush2.bf16.msra.mxu0 0
    %1758 = vmatprep.subr.bf16.mxu0 0
    %1759 = vmatpush2.bf16.msra.mxu0 0
    %1760 = vmatprep.subr.bf16.mxu0 0
    %1761 = vmatpush2.bf16.msra.mxu0 0
    %1762 = vmatprep.subr.bf16.mxu0 0
    %1763 = vmatpush2.bf16.msra.mxu0 0
    %1764 = vmatprep.subr.bf16.mxu0 0
    %1765 = vmatpush2.bf16.msra.mxu0 0
    %1766 = vmatprep.mubr.bf16.mxu0 0
    %1767 = vmatmul.mubr.bf16.gmra.mxu0 %v1729
    %v1768 = vpop.f32.mrf.mxu0
    %v1769 = vadd.f32 0.0, %v1768
    %v1770 = vpop.f32.mrf.mxu0
    %v1771 = vpop.f32.mrf.mxu0
    %v1772 = vpop.f32.mrf.mxu0
    %1773 = vdwg.mxu0
    %v1774 = vld [vmem:[%s875] sm:$0x1]
    %v1776 = vsel %vm824, %v1774, 0
    %1778 = vmatprep.subr.bf16.mxu0 0
    %1779 = vmatpush1.bf16.msra.mxu0 0
    %1780 = vmatprep.subr.bf16.mxu0 0
    %1781 = vmatpush1.bf16.msra.mxu0 0
    %1782 = vmatprep.subr.bf16.mxu0 0
    %1783 = vmatpush1.bf16.msra.mxu0 0
    %1784 = vmatprep.subr.bf16.mxu0 0
    %1785 = vmatpush1.bf16.msra.mxu0 0
    %1786 = vmatprep.subr.bf16.mxu0 0
    %1787 = vmatpush1.bf16.msra.mxu0 0
    %1788 = vmatprep.subr.bf16.mxu0 0
    %1789 = vmatpush1.bf16.msra.mxu0 0
    %1790 = vmatprep.subr.bf16.mxu0 0
    %1791 = vmatpush1.bf16.msra.mxu0 0
    %1792 = vmatprep.subr.bf16.mxu0 0
    %1793 = vmatpush1.bf16.msra.mxu0 %v1732
    %1794 = vmatprep.subr.bf16.mxu0 0
    %1795 = vmatpush2.bf16.msra.mxu0 0
    %1796 = vmatprep.subr.bf16.mxu0 0
    %1797 = vmatpush2.bf16.msra.mxu0 0
    %1798 = vmatprep.subr.bf16.mxu0 0
    %1799 = vmatpush2.bf16.msra.mxu0 0
    %1800 = vmatprep.subr.bf16.mxu0 0
    %1801 = vmatpush2.bf16.msra.mxu0 0
    %1802 = vmatprep.subr.bf16.mxu0 0
    %1803 = vmatpush2.bf16.msra.mxu0 0
    %1804 = vmatprep.subr.bf16.mxu0 0
    %1805 = vmatpush2.bf16.msra.mxu0 0
    %1806 = vmatprep.subr.bf16.mxu0 0
    %1807 = vmatpush2.bf16.msra.mxu0 0
    %1808 = vmatprep.subr.bf16.mxu0 0
    %1809 = vmatpush2.bf16.msra.mxu0 0
    %1810 = vmatprep.mubr.bf16.mxu0 0
    %1811 = vmatmul.mubr.bf16.gmra.mxu0 %v1776
    %v1812 = vpop.f32.mrf.mxu0
    %v1813 = vadd.f32 0.0, %v1812
    %v1814 = vpop.f32.mrf.mxu0
    %v1815 = vpop.f32.mrf.mxu0
    %v1816 = vpop.f32.mrf.mxu0
    %1817 = vdwg.mxu0
    %v1818 = vmax.f32 %v1769, %v1813
    %1820 = vrot.lane.b32.xlu0 %v1818, 112
    %v1821 = vpop.permute.xlu0 %1820
    %v1823 = vmax.f32 %v1818, %v1821
    %v1824 = vpack.c.bf16 %v1823, %v1823
    %v1827 = vunpack.c.l.s4 1966171168
    %v1828 = vunpack.c.0.s8 %v1827
    %v1829 = vlaneseq
    %v1830 = vshrl.u32 %v1829, 7
    %v1831 = vsub.s32 %v1828, %v1830
    %v1832 = vrot.slane %v1824, %v1831
    %v1834 = vunpack.c.l.s4 1966171168
    %v1835 = vunpack.c.0.s8 %v1834
    %v1836 = vlaneseq
    %v1837 = vshrl.u32 %v1836, 7
    %v1838 = vsub.s32 %v1835, %v1837
    %v1839 = vrot.slane %v1832, %v1838
    %v1841 = vshll.u32 %v1839, 16
    %vm1844 = vsmask.f32 7938
    %vm1845 = vmand %vm927, %vm1844
    %v1846 = vld [vmem:[#allocation3] sm:$0x1]
    %v1847 = vsel %vm1845, %v1841, %v1846
    %1848 = vst [vmem:[#allocation3] sm:$0x1] %v1847
    %1849 = vrot.lane.b32.xlu0 %v1839, 64
    %v1850 = vpop.permute.xlu0 %1849
    %vm1852 = vmand %vm956, %vm1844
    %v1853 = vld [vmem:[#allocation3] sm:$0x1]
    %v1854 = vsel %vm1852, %v1850, %v1853
    %1855 = vst [vmem:[#allocation3] sm:$0x1] %v1854
    %v1856 = vld [vmem:[#allocation3] sm:$0x1]
    %v1857 = vld [vmem:[%s7] sm:$0xf]
    %v1858 = vld [vmem:[%s7 + $0x4] sm:$0xf]
    %v1859 = vld [vmem:[%s7 + $0x8] sm:$0xf]
    %v1860 = vld [vmem:[%s7 + $0xc] sm:$0xf]
    %v1861 = vld [vmem:[%s7 + $0x10] sm:$0xf]
    %v1862 = vld [vmem:[%s7 + $0x14] sm:$0xf]
    %v1863 = vld [vmem:[%s7 + $0x18] sm:$0xf]
    %v1864 = vld [vmem:[%s7 + $0x1c] sm:$0xf]
    %v1865 = vld [vmem:[%s7 + $0x20] sm:$0xf]
    %v1866 = vld [vmem:[%s7 + $0x24] sm:$0xf]
    %v1867 = vld [vmem:[%s7 + $0x28] sm:$0xf]
    %v1868 = vld [vmem:[%s7 + $0x2c] sm:$0xf]
    %v1869 = vld [vmem:[%s7 + $0x30] sm:$0xf]
    %v1870 = vld [vmem:[%s7 + $0x34] sm:$0xf]
    %v1871 = vld [vmem:[%s7 + $0x38] sm:$0xf]
    %v1872 = vld [vmem:[%s7 + $0x3c] sm:$0xf]
    %v1873 = vld [vmem:[%s8] sm:$0x1]
    %v1875 = vlaneseq
    %v1876 = vshrl.u32 %v1875, 7
    %v1877 = vsub.s32 0, %v1876
    %v1878 = vrot.slane %v1873, %v1877
    %v1896 = vunpack.c.l.b16 %v1857
    %v1897 = vunpack.c.l.b16 %v1858
    %v1898 = vunpack.c.l.b16 %v1859
    %v1899 = vunpack.c.l.b16 %v1860
    %v1900 = vunpack.c.l.b16 %v1861
    %v1901 = vunpack.c.l.b16 %v1862
    %v1902 = vunpack.c.l.b16 %v1863
    %v1903 = vunpack.c.l.b16 %v1864
    %v1904 = vunpack.c.l.b16 %v1865
    %v1905 = vunpack.c.l.b16 %v1866
    %v1906 = vunpack.c.l.b16 %v1867
    %v1907 = vunpack.c.l.b16 %v1868
    %v1908 = vunpack.c.l.b16 %v1869
    %v1909 = vunpack.c.l.b16 %v1870
    %v1910 = vunpack.c.l.b16 %v1871
    %v1911 = vunpack.c.l.b16 %v1872
    %v1912 = vpack.c.b16 %v1897, %v1896
    %v1913 = vpack.c.b16 %v1899, %v1898
    %v1914 = vpack.c.b16 %v1901, %v1900
    %v1915 = vpack.c.b16 %v1903, %v1902
    %v1916 = vpack.c.b16 %v1905, %v1904
    %v1917 = vpack.c.b16 %v1907, %v1906
    %v1918 = vpack.c.b16 %v1909, %v1908
    %v1919 = vpack.c.b16 %v1911, %v1910
    %1928 = vmatprep.subr.bf16.mxu0 0
    %1929 = vmatpush1.bf16.msra.mxu0 %v1919
    %1930 = vmatprep.subr.bf16.mxu0 0
    %1931 = vmatpush1.bf16.msra.mxu0 %v1918
    %1932 = vmatprep.subr.bf16.mxu0 0
    %1933 = vmatpush1.bf16.msra.mxu0 %v1917
    %1934 = vmatprep.subr.bf16.mxu0 0
    %1935 = vmatpush1.bf16.msra.mxu0 %v1916
    %1936 = vmatprep.subr.bf16.mxu0 0
    %1937 = vmatpush1.bf16.msra.mxu0 %v1915
    %1938 = vmatprep.subr.bf16.mxu0 0
    %1939 = vmatpush1.bf16.msra.mxu0 %v1914
    %1940 = vmatprep.subr.bf16.mxu0 0
    %1941 = vmatpush1.bf16.msra.mxu0 %v1913
    %1942 = vmatprep.subr.bf16.mxu0 0
    %1943 = vmatpush1.bf16.msra.mxu0 %v1912
    %1944 = vmatprep.subr.bf16.mxu0 0
    %1945 = vmatpush2.bf16.msra.mxu0 0
    %1946 = vmatprep.subr.bf16.mxu0 0
    %1947 = vmatpush2.bf16.msra.mxu0 0
    %1948 = vmatprep.subr.bf16.mxu0 0
    %1949 = vmatpush2.bf16.msra.mxu0 0
    %1950 = vmatprep.subr.bf16.mxu0 0
    %1951 = vmatpush2.bf16.msra.mxu0 0
    %1952 = vmatprep.subr.bf16.mxu0 0
    %1953 = vmatpush2.bf16.msra.mxu0 0
    %1954 = vmatprep.subr.bf16.mxu0 0
    %1955 = vmatpush2.bf16.msra.mxu0 0
    %1956 = vmatprep.subr.bf16.mxu0 0
    %1957 = vmatpush2.bf16.msra.mxu0 0
    %1958 = vmatprep.subr.bf16.mxu0 0
    %1959 = vmatpush2.bf16.msra.mxu0 0
    %1960 = vmatprep.mubr.bf16.mxu0 0
    %1961 = vmatmul.mubr.bf16.gmra.mxu0 %v1856
    %v1962 = vpop.f32.mrf.mxu0
    %v1963 = vadd.f32 %v1878, %v1962
    %v1964 = vpop.f32.mrf.mxu0
    %v1965 = vpop.f32.mrf.mxu0
    %v1966 = vpop.f32.mrf.mxu0
    %1967 = vdwg.mxu0
    %v1968 = vmax.f32 %v1963, 0.0
    %v1969 = vpack.c.bf16 %v1968, %v1968
    %v1970 = vld [vmem:[%s9] sm:$0xf]
    %v1971 = vld [vmem:[%s9 + $0x4] sm:$0xf]
    %v1972 = vld [vmem:[%s9 + $0x8] sm:$0xf]
    %v1973 = vld [vmem:[%s9 + $0xc] sm:$0xf]
    %v1974 = vld [vmem:[%s10] sm:$0x1]
    %v1976 = vlaneseq
    %v1977 = vshrl.u32 %v1976, 7
    %v1978 = vsub.s32 0, %v1977
    %v1979 = vrot.slane %v1974, %v1978
    %v1985 = vunpack.c.l.b16 %v1970
    %v1986 = vunpack.c.l.b16 %v1971
    %v1987 = vunpack.c.l.b16 %v1972
    %v1988 = vunpack.c.l.b16 %v1973
    %v1989 = vpack.c.b16 %v1986, %v1985
    %v1990 = vpack.c.b16 %v1988, %v1987
    %vm1993 = vcmask 261120
    %v1995 = vsel %vm1993, %v1969, 0
    %1997 = vmatprep.subr.bf16.mxu0 0
    %1998 = vmatpush1.bf16.msra.mxu0 0
    %1999 = vmatprep.subr.bf16.mxu0 0
    %2000 = vmatpush1.bf16.msra.mxu0 0
    %2001 = vmatprep.subr.bf16.mxu0 0
    %2002 = vmatpush1.bf16.msra.mxu0 0
    %2003 = vmatprep.subr.bf16.mxu0 0
    %2004 = vmatpush1.bf16.msra.mxu0 0
    %2005 = vmatprep.subr.bf16.mxu0 0
    %2006 = vmatpush1.bf16.msra.mxu0 0
    %2007 = vmatprep.subr.bf16.mxu0 0
    %2008 = vmatpush1.bf16.msra.mxu0 0
    %2009 = vmatprep.subr.bf16.mxu0 0
    %2010 = vmatpush1.bf16.msra.mxu0 %v1990
    %2011 = vmatprep.subr.bf16.mxu0 0
    %2012 = vmatpush1.bf16.msra.mxu0 %v1989
    %2013 = vmatprep.subr.bf16.mxu0 0
    %2014 = vmatpush2.bf16.msra.mxu0 0
    %2015 = vmatprep.subr.bf16.mxu0 0
    %2016 = vmatpush2.bf16.msra.mxu0 0
    %2017 = vmatprep.subr.bf16.mxu0 0
    %2018 = vmatpush2.bf16.msra.mxu0 0
    %2019 = vmatprep.subr.bf16.mxu0 0
    %2020 = vmatpush2.bf16.msra.mxu0 0
    %2021 = vmatprep.subr.bf16.mxu0 0
    %2022 = vmatpush2.bf16.msra.mxu0 0
    %2023 = vmatprep.subr.bf16.mxu0 0
    %2024 = vmatpush2.bf16.msra.mxu0 0
    %2025 = vmatprep.subr.bf16.mxu0 0
    %2026 = vmatpush2.bf16.msra.mxu0 0
    %2027 = vmatprep.subr.bf16.mxu0 0
    %2028 = vmatpush2.bf16.msra.mxu0 0
    %2029 = vmatprep.mubr.bf16.mxu0 0
    %2030 = vmatmul.mubr.bf16.gmra.mxu0 %v1995
    %v2031 = vpop.f32.mrf.mxu0
    %v2032 = vadd.f32 %v1979, %v2031
    %v2033 = vpop.f32.mrf.mxu0
    %v2034 = vpop.f32.mrf.mxu0
    %v2035 = vpop.f32.mrf.mxu0
    %2036 = vdwg.mxu0
    %vm2037 = vcmask 74752
    %v2038 = vsel %vm2037, %v2032, -inf
    %2039 = vmax.xlane.f32.xlu0 %v2038
    %v2040 = vpop.xlane.xlu0 %2039
    %v2041 = vsub.f32 %v2032, %v2040
    %v2042 = vmul.f32 %v2041, 1.442695
    %v2043 = vpow.pop %v2042
    %v2044 = vsel %vm2037, %v2043, 0.0
    %2045 = vadd.xlane.f32.xlu0 %v2044
    %v2046 = vpop.xlane.xlu0 %2045
    %v2047 = vrcp.pop %v2046
    %v2048 = vmul.f32 %v2046, %v2047
    %v2049 = vsub.f32 2.0, %v2048
    %v2050 = vmul.f32 %v2047, %v2049
    %v2051 = vmul.f32 %v2043, %v2050
    %2052 = vst.msk [vmem:[#allocation4] sm:$0x3] %vm2037, %v2051
    // Predicated region
    $region46: #{_lambda_.1} parent=1 // pred_check
      _
    $region47: #{_lambda_.1} parent=1 // pred_check_branch
      %2054 = sbr.rel (0) target = $region49
    $region48: #{_lambda_.1} parent=1 // pred_region
      %s2056 = ssub.s32 32, 32
      %2057 = vsyncadd [#allocation5], %s2056
      %s2059 = sshll.u32 [#allocation4], 4
      %s2060 = int_to_ptr.vmem [resolvable:$true] %s2059
      %2062 = dma.vmem_to_hbm [thread:$0]  %s2060, 32, %s11, [#allocation5]
    $region49: #{_lambda_.1} parent=1 // pred_fallthru
      _
    // Predicated region
    $region50: #{_lambda_.1} parent=1 // pred_check
      _
    $region51: #{_lambda_.1} parent=1 // pred_check_branch
      %2064 = sbr.rel (0) target = $region53
    $region52: #{_lambda_.1} parent=1 // pred_region
      %2065 = dma.done [#allocation5], 32
    $region53: #{_lambda_.1} parent=1 // pred_fallthru
      _
    %2066 = vsyncpa [#allocation5], 1

</llo_original>
